<compile_context>
chip_gen: v5e
topology: v5e:2x2
jax: 0.10.0
libtpu: 0.0.40
codegen_flags: <defaults>
</compile_context>

<pallas_src>
import functools

import jax
import jax.numpy as jnp
import numpy as np
from jax.experimental import pallas as pl
from jax.experimental.pallas import tpu as pltpu


# -----------------------------------------------------------------------------
# Pallas kernel: fused gated-conv matmul + global max pool.
# Grid = (B // tile_b, cdiv(N, tile_n)); each step sees (tile_b, tile_n, K8).
# -----------------------------------------------------------------------------
def _malconv_pool_kernel(x8_ref, wf_ref, b_ref, o_ref, acc_ref, *,
                         n_windows, tile_n, tile_b):
    # x8_ref : (tile_b, tile_n, K8) bf16  window-flattened 8-channel embeddings
    # wf_ref : (K8, 256)            bf16  block-diag [[conv1_w, 0], [0, conv2_w]]
    # b_ref  : (1, 256)             f32   [conv1_b | conv2_b]
    # o_ref  : (tile_b, 1, 128)     f32   pooled features for these batch rows
    # acc_ref: (tile_b, 1, 128)     f32   running max over window tiles (scratch)
    n = pl.program_id(1)

    @pl.when(n == 0)
    def _init():
        acc_ref[...] = jnp.full(acc_ref.shape, -jnp.inf, acc_ref.dtype)

    w = wf_ref[...]                      # hoisted out of the batch-row loop
    bias = b_ref[...]
    needs_mask = (n_windows % tile_n) != 0   # static Python bool

    for i in range(tile_b):              # static unroll over batch rows in block
        x = x8_ref[i]                                                  # (tile_n, K8) bf16
        y = jnp.dot(x, w, preferred_element_type=jnp.float32) + bias   # (tile_n, 256) f32
        gated = y[:, :128] * jax.nn.sigmoid(y[:, 128:])                # (tile_n, 128)
        if needs_mask:
            # cdiv remainder tile: out-of-range windows hold DMA garbage; mask
            # them to -inf (NOT zero) so they can never win the max.
            widx = n * tile_n + jax.lax.broadcasted_iota(jnp.int32, gated.shape, 0)
            gated = jnp.where(widx < n_windows, gated, -jnp.inf)
        acc_ref[i] = jnp.maximum(acc_ref[i], jnp.max(gated, axis=0, keepdims=True))

    @pl.when(n == pl.num_programs(1) - 1)
    def _store():
        o_ref[...] = acc_ref[...]


def _fused_conv_weight(conv1_w, conv2_w):
    # Conv1d weights (O=128, C=4, W) -> block-diagonal (W*8, 256) matching the
    # x8 flatten order k*8 + c (c = 0..3 conv path, c = 4..7 gating path).
    w1t = jnp.transpose(conv1_w, (2, 1, 0))    # (W, 4, 128)
    w2t = jnp.transpose(conv2_w, (2, 1, 0))    # (W, 4, 128)
    z = jnp.zeros_like(w1t)
    top = jnp.concatenate([w1t, z], axis=-1)   # channels 0..3 -> lanes [0, 128)
    bot = jnp.concatenate([z, w2t], axis=-1)   # channels 4..7 -> lanes [128, 256)
    W = w1t.shape[0]
    return jnp.concatenate([top, bot], axis=1).reshape(W * 8, 256)


def _pick_tiles(B, N, K8, *, cap_n=512, act_budget=8 << 20):
    """Choose (tile_b, tile_n).

    tile_n: full N if small, else <= cap_n (512 keeps v5e/v6e near the HBM
    roofline while fitting the v7x 64 MiB VMEM budget), always a multiple of 8
    when it does not equal N, and bounded so one activation buffer stays under
    `act_budget` bytes.  tile_b: largest divisor of B (<= 8) whose block still
    fits the activation budget, so small-N configs amortize grid-step overhead.
    """
    rows_cap = max(8, min(cap_n, ((act_budget // (K8 * 2)) // 8) * 8))
    tile_n = N if N <= rows_cap else rows_cap
    row_bytes = tile_n * K8 * 2
    tile_b = 1
    for d in range(1, min(B, 8) + 1):
        if B % d == 0 and d * row_bytes <= act_budget:
            tile_b = d
    return tile_b, tile_n


@functools.partial(jax.jit, static_argnames=("window_size",))
def malconv_forward(tokens, params, window_size):
    B, L = tokens.shape
    W = window_size
    N = L // W                                   # stride == kernel -> non-overlapping windows
    if N == 0:
        raise ValueError("input length must be >= window_size")
    K8 = W * 8

    # --- XLA glue: bf16 gather + window flattening (no clean in-kernel gather) ---
    # Cast the tiny (257, 8) table BEFORE the gather: the gather output is
    # written directly in bf16 (half the write traffic, no extra downcast pass).
    table = params["embed"].astype(jnp.bfloat16)
    tok_w = tokens[:, :N * W].reshape(B, N, W)   # trailing L % W bytes unused (Conv1d stride=W)
    x8 = table[tok_w].reshape(B, N, K8)          # (B, N, W, 8) -> (B, N, W*8), layout-free merge

    wf = _fused_conv_weight(params["conv1_w"], params["conv2_w"]).astype(jnp.bfloat16)
    bias = jnp.concatenate([params["conv1_b"], params["conv2_b"]]).reshape(1, 256).astype(jnp.float32)
    # No K8 padding of x8/wf in HBM: block last dim == full array dim is legal,
    # Mosaic pads the contraction internally in VMEM.

    tile_b, tile_n = _pick_tiles(B, N, K8)
    grid = (B // tile_b, pl.cdiv(N, tile_n))

    # Explicit VMEM budget (v7x only has 64 MiB physical): double-buffered
    # activation blocks + (conservatively double-counted) weight + slack.
    act_bytes = tile_b * tile_n * K8 * 2
    wf_bytes = K8 * 256 * 2
    vmem_limit = int(min(max(2 * act_bytes + 2 * wf_bytes + (4 << 20), 32 << 20), 64 << 20))

    kernel = functools.partial(_malconv_pool_kernel,
                               n_windows=N, tile_n=tile_n, tile_b=tile_b)

    pooled = pl.pallas_call(
        kernel,
        out_shape=jax.ShapeDtypeStruct((B, 1, 128), jnp.float32),
        grid_spec=pltpu.PrefetchScalarGridSpec(
            num_scalar_prefetch=0,
            grid=grid,
            in_specs=[
                pl.BlockSpec((tile_b, tile_n, K8), lambda b, n: (b, n, 0)),
                # Constant weight/bias blocks: single-buffer to reclaim VMEM.
                pl.BlockSpec((K8, 256), lambda b, n: (0, 0),
                             pipeline_mode=pl.Buffered(1)),
                pl.BlockSpec((1, 256), lambda b, n: (0, 0),
                             pipeline_mode=pl.Buffered(1)),
            ],
            out_specs=pl.BlockSpec((tile_b, 1, 128), lambda b, n: (b, 0, 0)),
            scratch_shapes=[pltpu.VMEM((tile_b, 1, 128), jnp.float32)],
        ),
        compiler_params=pltpu.CompilerParams(
            dimension_semantics=("parallel", "arbitrary"),
            vmem_limit_bytes=vmem_limit,
        ),
    )(x8, wf, bias)

    pooled = pooled.reshape(B, 128)
    # Tiny epilogue (Linear 128->128 and 128->1 on B rows) in XLA: negligible
    # FLOPs, keeps the Pallas output lane-dense (no masked (B, 1) store).
    h = pooled @ params["fc1_w"].T + params["fc1_b"]
    return h @ params["fc2_w"].T + params["fc2_b"]               # (B, 1), no final sigmoid


def malconv_reference(tokens, params, window_size):
    """Pure-JAX f32 reference matching the PyTorch forward."""
    emb = params["embed"][tokens]                  # (B, L, 8)
    x = jnp.transpose(emb, (0, 2, 1))              # (B, 8, L)
    W = window_size

    def conv1d_stride_eq_kernel(xp, w, b):
        B, C, L = xp.shape
        N = L // W
        xw = xp[:, :, :N * W].reshape(B, C, N, W)
        return jnp.einsum("bcnw,ocw->bon", xw, w) + b[None, :, None]

    cnn_value = conv1d_stride_eq_kernel(x[:, :4], params["conv1_w"], params["conv1_b"])
    gating = jax.nn.sigmoid(
        conv1d_stride_eq_kernel(x[:, 4:], params["conv2_w"], params["conv2_b"]))
    g = cnn_value * gating                         # (B, 128, N)
    p = jnp.max(g, axis=-1)                        # MaxPool1d(N) -> (B, 128)
    h = p @ params["fc1_w"].T + params["fc1_b"]
    return h @ params["fc2_w"].T + params["fc2_b"]  # (B, 1)


def init_params(key, window_size):
    ks = jax.random.split(key, 8)
    embed = 0.02 * jax.random.normal(ks[0], (257, 8), jnp.float32)
    embed = embed.at[0].set(0.0)                   # padding_idx=0
    conv1_w = 0.05 * jax.random.normal(ks[1], (128, 4, window_size), jnp.float32)
    conv1_b = 0.05 * jax.random.normal(ks[2], (128,), jnp.float32)
    conv2_w = 0.05 * jax.random.normal(ks[3], (128, 4, window_size), jnp.float32)
    conv2_b = 0.05 * jax.random.normal(ks[4], (128,), jnp.float32)
    fc1_w = 0.05 * jax.random.normal(ks[5], (128, 128), jnp.float32)
    fc1_b = jnp.zeros((128,), jnp.float32)
    fc2_w = 0.05 * jax.random.normal(ks[6], (1, 128), jnp.float32)
    fc2_b = jnp.zeros((1,), jnp.float32)
    return dict(embed=embed, conv1_w=conv1_w, conv1_b=conv1_b,
                conv2_w=conv2_w, conv2_b=conv2_b,
                fc1_w=fc1_w, fc1_b=fc1_b, fc2_w=fc2_w, fc2_b=fc2_b)


if __name__ == "__main__":
    # Small shapes consistent with the module: input_length=2048, window_size=256
    # -> N = 8 windows, fused contraction K = 2048 per window.
    B, INPUT_LENGTH, WINDOW = 2, 2048, 256

    key = jax.random.PRNGKey(0)
    k_tok, k_par = jax.random.split(key)
    params = init_params(k_par, WINDOW)
    tokens = jax.random.randint(k_tok, (B, INPUT_LENGTH), 0, 257, dtype=jnp.int32)

    out = malconv_forward(tokens, params, WINDOW)
    out = jax.block_until_ready(out)

    ref = jax.block_until_ready(malconv_reference(tokens, params, WINDOW))
    # Kernel uses bf16 activations (f32 accumulation); compare against the f32
    # reference with a correspondingly relaxed tolerance.
    np.testing.assert_allclose(np.asarray(out), np.asarray(ref), rtol=1e-2, atol=1e-2)

    print("KERNEL_OK")
</pallas_src>

<mosaic_0001>
module attributes {stable_mosaic.version = 11 : i64} {
  func.func @_malconv_pool_kernel(%arg0: i32, %arg1: i32, %arg2: memref<2x8x2048xbf16, #tpu.memory_space<vmem>>, %arg3: memref<2048x256xbf16, #tpu.memory_space<vmem>>, %arg4: memref<1x256xf32, #tpu.memory_space<vmem>>, %arg5: memref<2x1x128xf32, #tpu.memory_space<vmem>>, %arg6: memref<2x1x128xf32, #tpu.memory_space<vmem>>) attributes {dimension_semantics = [#tpu.dimension_semantics<parallel>, #tpu.dimension_semantics<arbitrary>], iteration_bounds = array<i64: 1, 1>, scalar_prefetch = 0 : i64, scratch_operands = 1 : i64, tpu.core_type = #tpu.core_type<tc>, window_params = [{transform_indices = @transform_0, window_bounds = array<i64: 2, 8, 2048>}, {pipeline_mode = #tpu.pipeline_mode<synchronous>, transform_indices = @transform_1, window_bounds = array<i64: 2048, 256>}, {pipeline_mode = #tpu.pipeline_mode<synchronous>, transform_indices = @transform_2, window_bounds = array<i64: 1, 256>}, {transform_indices = @transform_3, window_bounds = array<i64: 2, 1, 128>}]} {
    %c0_i32 = arith.constant 0 : i32
    %0 = arith.cmpi eq, %arg1, %c0_i32 : i32
    %1 = arith.extui %0 : i1 to i32
    %c0_i32_0 = arith.constant 0 : i32
    %2 = arith.cmpi ne, %1, %c0_i32_0 : i32
    scf.if %2 {
      %cst_28 = arith.constant 0xFF800000 : f32
      %50 = vector.broadcast %cst_28 : f32 to vector<2x1x128xf32>
      %c0_29 = arith.constant 0 : index
      %c0_30 = arith.constant 0 : index
      %c0_31 = arith.constant 0 : index
      %51 = vector.load %arg6[%c0_29, %c0_30, %c0_31] : memref<2x1x128xf32, #tpu.memory_space<vmem>>, vector<2x1x128xf32>
      tpu.vector_store %arg6[%c0_29, %c0_30, %c0_31], %50 {strides = array<i32>} : memref<2x1x128xf32, #tpu.memory_space<vmem>>, vector<2x1x128xf32>,
    } else {
    }
    %c0 = arith.constant 0 : index
    %c0_1 = arith.constant 0 : index
    %3 = vector.load %arg3[%c0, %c0_1] : memref<2048x256xbf16, #tpu.memory_space<vmem>>, vector<2048x256xbf16>
    %c0_2 = arith.constant 0 : index
    %c0_3 = arith.constant 0 : index
    %4 = vector.load %arg4[%c0_2, %c0_3] : memref<1x256xf32, #tpu.memory_space<vmem>>, vector<1x256xf32>
    %c0_4 = arith.constant 0 : index
    %c0_5 = arith.constant 0 : index
    %c0_6 = arith.constant 0 : index
    %5 = vector.load %arg2[%c0_4, %c0_5, %c0_6] : memref<2x8x2048xbf16, #tpu.memory_space<vmem>>, vector<1x8x2048xbf16>
    %6 = vector.shape_cast %5 : vector<1x8x2048xbf16> to vector<8x2048xbf16>
    %cst = arith.constant dense<0.000000e+00> : vector<8x256xf32>
    %7 = tpu.matmul %6, %3, %cst {dimension_numbers = #tpu.dot_dimension_numbers<[1], [0], [0], [1], [0, 0, 1, 1], [], []>} : vector<8x2048xbf16>, vector<2048x256xbf16>, vector<8x256xf32> -> vector<8x256xf32>
    %8 = vector.broadcast %4 : vector<1x256xf32> to vector<8x256xf32>
    %9 = arith.addf %7, %8 : vector<8x256xf32>
    %10 = vector.extract_strided_slice %9 {offsets = [0, 0], sizes = [8, 128], strides = [1, 1]} : vector<8x256xf32> to vector<8x128xf32>
    %11 = vector.extract_strided_slice %9 {offsets = [0, 128], sizes = [8, 128], strides = [1, 1]} : vector<8x256xf32> to vector<8x128xf32>
    %12 = arith.negf %11 : vector<8x128xf32>
    %13 = math.exp %12 : vector<8x128xf32>
    %cst_7 = arith.constant 1.000000e+00 : f32
    %14 = vector.broadcast %cst_7 : f32 to vector<8x128xf32>
    %15 = arith.addf %14, %13 : vector<8x128xf32>
    %16 = arith.divf %14, %15 : vector<8x128xf32>
    %17 = arith.mulf %10, %16 : vector<8x128xf32>
    %c0_8 = arith.constant 0 : index
    %c0_9 = arith.constant 0 : index
    %c0_10 = arith.constant 0 : index
    %18 = vector.load %arg6[%c0_8, %c0_9, %c0_10] : memref<2x1x128xf32, #tpu.memory_space<vmem>>, vector<1x1x128xf32>
    %19 = vector.shape_cast %18 : vector<1x1x128xf32> to vector<1x128xf32>
    %cst_11 = arith.constant dense<0xFF800000> : vector<128xf32>
    %20 = vector.multi_reduction <maximumf>, %17, %cst_11 [0] : vector<8x128xf32> to vector<128xf32>
    %21 = vector.shape_cast %20 : vector<128xf32> to vector<1x128xf32>
    %22 = arith.maximumf %19, %21 : vector<1x128xf32>
    %c0_12 = arith.constant 0 : index
    %c0_13 = arith.constant 0 : index
    %c0_14 = arith.constant 0 : index
    %23 = vector.load %arg6[%c0_12, %c0_13, %c0_14] : memref<2x1x128xf32, #tpu.memory_space<vmem>>, vector<1x1x128xf32>
    %24 = vector.shape_cast %23 : vector<1x1x128xf32> to vector<1x128xf32>
    %25 = vector.shape_cast %22 : vector<1x128xf32> to vector<1x1x128xf32>
    tpu.vector_store %arg6[%c0_12, %c0_13, %c0_14], %25 {strides = array<i32>} : memref<2x1x128xf32, #tpu.memory_space<vmem>>, vector<1x1x128xf32>,
    %c1 = arith.constant 1 : index
    %c0_15 = arith.constant 0 : index
    %c0_16 = arith.constant 0 : index
    %26 = vector.load %arg2[%c1, %c0_15, %c0_16] : memref<2x8x2048xbf16, #tpu.memory_space<vmem>>, vector<1x8x2048xbf16>
    %27 = vector.shape_cast %26 : vector<1x8x2048xbf16> to vector<8x2048xbf16>
    %cst_17 = arith.constant dense<0.000000e+00> : vector<8x256xf32>
    %28 = tpu.matmul %27, %3, %cst_17 {dimension_numbers = #tpu.dot_dimension_numbers<[1], [0], [0], [1], [0, 0, 1, 1], [], []>} : vector<8x2048xbf16>, vector<2048x256xbf16>, vector<8x256xf32> -> vector<8x256xf32>
    %29 = vector.broadcast %4 : vector<1x256xf32> to vector<8x256xf32>
    %30 = arith.addf %28, %29 : vector<8x256xf32>
    %31 = vector.extract_strided_slice %30 {offsets = [0, 0], sizes = [8, 128], strides = [1, 1]} : vector<8x256xf32> to vector<8x128xf32>
    %32 = vector.extract_strided_slice %30 {offsets = [0, 128], sizes = [8, 128], strides = [1, 1]} : vector<8x256xf32> to vector<8x128xf32>
    %33 = arith.negf %32 : vector<8x128xf32>
    %34 = math.exp %33 : vector<8x128xf32>
    %cst_18 = arith.constant 1.000000e+00 : f32
    %35 = vector.broadcast %cst_18 : f32 to vector<8x128xf32>
    %36 = arith.addf %35, %34 : vector<8x128xf32>
    %37 = arith.divf %35, %36 : vector<8x128xf32>
    %38 = arith.mulf %31, %37 : vector<8x128xf32>
    %c1_19 = arith.constant 1 : index
    %c0_20 = arith.constant 0 : index
    %c0_21 = arith.constant 0 : index
    %39 = vector.load %arg6[%c1_19, %c0_20, %c0_21] : memref<2x1x128xf32, #tpu.memory_space<vmem>>, vector<1x1x128xf32>
    %40 = vector.shape_cast %39 : vector<1x1x128xf32> to vector<1x128xf32>
    %cst_22 = arith.constant dense<0xFF800000> : vector<128xf32>
    %41 = vector.multi_reduction <maximumf>, %38, %cst_22 [0] : vector<8x128xf32> to vector<128xf32>
    %42 = vector.shape_cast %41 : vector<128xf32> to vector<1x128xf32>
    %43 = arith.maximumf %40, %42 : vector<1x128xf32>
    %c1_23 = arith.constant 1 : index
    %c0_24 = arith.constant 0 : index
    %c0_25 = arith.constant 0 : index
    %44 = vector.load %arg6[%c1_23, %c0_24, %c0_25] : memref<2x1x128xf32, #tpu.memory_space<vmem>>, vector<1x1x128xf32>
    %45 = vector.shape_cast %44 : vector<1x1x128xf32> to vector<1x128xf32>
    %46 = vector.shape_cast %43 : vector<1x128xf32> to vector<1x1x128xf32>
    tpu.vector_store %arg6[%c1_23, %c0_24, %c0_25], %46 {strides = array<i32>} : memref<2x1x128xf32, #tpu.memory_space<vmem>>, vector<1x1x128xf32>,
    %c0_i32_26 = arith.constant 0 : i32
    %47 = arith.cmpi eq, %arg1, %c0_i32_26 : i32
    %48 = arith.extui %47 : i1 to i32
    %c0_i32_27 = arith.constant 0 : i32
    %49 = arith.cmpi ne, %48, %c0_i32_27 : i32
    scf.if %49 {
      %c0_28 = arith.constant 0 : index
      %c0_29 = arith.constant 0 : index
      %c0_30 = arith.constant 0 : index
      %50 = vector.load %arg6[%c0_28, %c0_29, %c0_30] : memref<2x1x128xf32, #tpu.memory_space<vmem>>, vector<2x1x128xf32>
      %c0_31 = arith.constant 0 : index
      %c0_32 = arith.constant 0 : index
      %c0_33 = arith.constant 0 : index
      %51 = vector.load %arg5[%c0_31, %c0_32, %c0_33] : memref<2x1x128xf32, #tpu.memory_space<vmem>>, vector<2x1x128xf32>
      tpu.vector_store %arg5[%c0_31, %c0_32, %c0_33], %50 {strides = array<i32>} : memref<2x1x128xf32, #tpu.memory_space<vmem>>, vector<2x1x128xf32>,
    } else {
    }
    return
  }
  func.func @transform_0(%arg0: i32, %arg1: i32) -> (i32, i32, i32) {
    %c0_i32 = arith.constant 0 : i32
    %c0_i32_0 = arith.constant 0 : i32
    return %arg0, %arg1, %c0_i32 : i32, i32, i32
  }
  func.func @transform_1(%arg0: i32, %arg1: i32) -> (i32, i32) {
    %c0_i32 = arith.constant 0 : i32
    %c0_i32_0 = arith.constant 0 : i32
    %c0_i32_1 = arith.constant 0 : i32
    return %c0_i32, %c0_i32_0 : i32, i32
  }
  func.func @transform_2(%arg0: i32, %arg1: i32) -> (i32, i32) {
    %c0_i32 = arith.constant 0 : i32
    %c0_i32_0 = arith.constant 0 : i32
    %c0_i32_1 = arith.constant 0 : i32
    return %c0_i32, %c0_i32_0 : i32, i32
  }
  func.func @transform_3(%arg0: i32, %arg1: i32) -> (i32, i32, i32) {
    %c0_i32 = arith.constant 0 : i32
    %c0_i32_0 = arith.constant 0 : i32
    %c0_i32_1 = arith.constant 0 : i32
    return %arg0, %c0_i32, %c0_i32_0 : i32, i32, i32
  }
}

</mosaic_0001>

<llo_original>
// kernel: malconv_forward.1
$region0: #{malconv_forward.1}
  #allocation0 [shape = 'u32[]', space=smem, size = 0x4, offset = 0x4, fixed_abs, tag = 'smem constant byte address 0x4 - core index']
  #allocation1 [shape = 'u32[72,128]{1,0:T(1,128)}', space=vmem, size = 0x9000, scoped, tag = 'internal scratch']
  #allocation2 [shape = 'f32[2,1,128]{2,1,0:T(1,128)}', space=vmem, size = 0x400, scoped, tag = 'scratch operand']
  %s0 = inlined_call_operand.vmem [shape: bf16[2,8,2048], index: 0, kind: input, shape index: {}]
  %s1 = inlined_call_operand.vmem [shape: bf16[2048,256], index: 1, kind: input, shape index: {}]
  %s2 = inlined_call_operand.vmem [shape: f32[1,256], index: 2, kind: input, shape index: {}]
  %s3 = inlined_call_operand.vmem [shape: f32[2,1,128], index: 3, kind: output, shape index: {}]
  %s4 = sld [smem:[#allocation0]]
  $region30: #{malconv_forward.1} parent=0
    _
  %s6 = ssub.s32 1, %s4
  %s7 = scalar_select 0, %s6, %s4
  // Predicated region
  $region2: #{malconv_forward.1} parent=0 // pred_check
    _
  $region3: #{malconv_forward.1} parent=0 // pred_check_branch
    %9 = sbr.rel (0) target = $region5
  $region4: #{malconv_forward.1} parent=0 // pred_region
    _
  $region5: #{malconv_forward.1} parent=0 // pred_fallthru
    _
  // Predicated region
  $region6: #{malconv_forward.1} parent=0 // pred_check
    _
  $region7: #{malconv_forward.1} parent=0 // pred_check_branch
    %11 = sbr.rel (0) target = $region9
  $region8: #{malconv_forward.1} parent=0 // pred_region
    _
  $region9: #{malconv_forward.1} parent=0 // pred_fallthru
    _
  // Predicated region
  $region10: #{malconv_forward.1} parent=0 // pred_check
    _
  $region11: #{malconv_forward.1} parent=0 // pred_check_branch
    %13 = sbr.rel (0) target = $region13
  $region12: #{malconv_forward.1} parent=0 // pred_region
    _
  $region13: #{malconv_forward.1} parent=0 // pred_fallthru
    _
  %p14 = scmp.eq.s32.totalorder 0, 0
  // Predicated region
  $region14: #{malconv_forward.1} parent=0 // pred_check
    %p15 = pneg %p14
  $region15: #{malconv_forward.1} parent=0 // pred_check_branch
    %17 = sbr.rel (%p15) target = $region17
  $region16: #{malconv_forward.1} parent=0 // pred_region
    %18 = vst [vmem:[#allocation2] sm:$0x1] -inf
    %19 = vst [vmem:[#allocation2 + $0x1] sm:$0x1] -inf
  $region17: #{malconv_forward.1} parent=0 // pred_fallthru
    _
  %v20 = vld [vmem:[%s1] sm:$0xff]
  %v21 = vld [vmem:[%s1 + $0x8] sm:$0xff]
  %v22 = vld [vmem:[%s1 + $0x10] sm:$0xff]
  %v23 = vld [vmem:[%s1 + $0x18] sm:$0xff]
  %v24 = vld [vmem:[%s1 + $0x20] sm:$0xff]
  %v25 = vld [vmem:[%s1 + $0x28] sm:$0xff]
  %v26 = vld [vmem:[%s1 + $0x30] sm:$0xff]
  %v27 = vld [vmem:[%s1 + $0x38] sm:$0xff]
  %v28 = vld [vmem:[%s1 + $0x40] sm:$0xff]
  %v29 = vld [vmem:[%s1 + $0x48] sm:$0xff]
  %v30 = vld [vmem:[%s1 + $0x50] sm:$0xff]
  %v31 = vld [vmem:[%s1 + $0x58] sm:$0xff]
  %v32 = vld [vmem:[%s1 + $0x60] sm:$0xff]
  %v33 = vld [vmem:[%s1 + $0x68] sm:$0xff]
  %v34 = vld [vmem:[%s1 + $0x70] sm:$0xff]
  %v35 = vld [vmem:[%s1 + $0x78] sm:$0xff]
  %v36 = vld [vmem:[%s1 + $0x80] sm:$0xff]
  %v37 = vld [vmem:[%s1 + $0x88] sm:$0xff]
  %v38 = vld [vmem:[%s1 + $0x90] sm:$0xff]
  %v39 = vld [vmem:[%s1 + $0x98] sm:$0xff]
  %v40 = vld [vmem:[%s1 + $0xa0] sm:$0xff]
  %v41 = vld [vmem:[%s1 + $0xa8] sm:$0xff]
  %v42 = vld [vmem:[%s1 + $0xb0] sm:$0xff]
  %v43 = vld [vmem:[%s1 + $0xb8] sm:$0xff]
  %v44 = vld [vmem:[%s1 + $0xc0] sm:$0xff]
  %v45 = vld [vmem:[%s1 + $0xc8] sm:$0xff]
  %v46 = vld [vmem:[%s1 + $0xd0] sm:$0xff]
  %v47 = vld [vmem:[%s1 + $0xd8] sm:$0xff]
  %v48 = vld [vmem:[%s1 + $0xe0] sm:$0xff]
  %v49 = vld [vmem:[%s1 + $0xe8] sm:$0xff]
  %v50 = vld [vmem:[%s1 + $0xf0] sm:$0xff]
  %v51 = vld [vmem:[%s1 + $0xf8] sm:$0xff]
  %v52 = vld [vmem:[%s1 + $0x100] sm:$0xff]
  %v53 = vld [vmem:[%s1 + $0x108] sm:$0xff]
  %v54 = vld [vmem:[%s1 + $0x110] sm:$0xff]
  %v55 = vld [vmem:[%s1 + $0x118] sm:$0xff]
  %v56 = vld [vmem:[%s1 + $0x120] sm:$0xff]
  %v57 = vld [vmem:[%s1 + $0x128] sm:$0xff]
  %v58 = vld [vmem:[%s1 + $0x130] sm:$0xff]
  %v59 = vld [vmem:[%s1 + $0x138] sm:$0xff]
  %v60 = vld [vmem:[%s1 + $0x140] sm:$0xff]
  %v61 = vld [vmem:[%s1 + $0x148] sm:$0xff]
  %v62 = vld [vmem:[%s1 + $0x150] sm:$0xff]
  %v63 = vld [vmem:[%s1 + $0x158] sm:$0xff]
  %v64 = vld [vmem:[%s1 + $0x160] sm:$0xff]
  %v65 = vld [vmem:[%s1 + $0x168] sm:$0xff]
  %v66 = vld [vmem:[%s1 + $0x170] sm:$0xff]
  %v67 = vld [vmem:[%s1 + $0x178] sm:$0xff]
  %v68 = vld [vmem:[%s1 + $0x180] sm:$0xff]
  %v69 = vld [vmem:[%s1 + $0x188] sm:$0xff]
  %v70 = vld [vmem:[%s1 + $0x190] sm:$0xff]
  %v71 = vld [vmem:[%s1 + $0x198] sm:$0xff]
  %v72 = vld [vmem:[%s1 + $0x1a0] sm:$0xff]
  %v73 = vld [vmem:[%s1 + $0x1a8] sm:$0xff]
  %v74 = vld [vmem:[%s1 + $0x1b0] sm:$0xff]
  %v75 = vld [vmem:[%s1 + $0x1b8] sm:$0xff]
  %v76 = vld [vmem:[%s1 + $0x1c0] sm:$0xff]
  %v77 = vld [vmem:[%s1 + $0x1c8] sm:$0xff]
  %v78 = vld [vmem:[%s1 + $0x1d0] sm:$0xff]
  %v79 = vld [vmem:[%s1 + $0x1d8] sm:$0xff]
  %v80 = vld [vmem:[%s1 + $0x1e0] sm:$0xff]
  %v81 = vld [vmem:[%s1 + $0x1e8] sm:$0xff]
  %v82 = vld [vmem:[%s1 + $0x1f0] sm:$0xff]
  %v83 = vld [vmem:[%s1 + $0x1f8] sm:$0xff]
  %v84 = vld [vmem:[%s1 + $0x200] sm:$0xff]
  %v85 = vld [vmem:[%s1 + $0x208] sm:$0xff]
  %v86 = vld [vmem:[%s1 + $0x210] sm:$0xff]
  %v87 = vld [vmem:[%s1 + $0x218] sm:$0xff]
  %v88 = vld [vmem:[%s1 + $0x220] sm:$0xff]
  %v89 = vld [vmem:[%s1 + $0x228] sm:$0xff]
  %v90 = vld [vmem:[%s1 + $0x230] sm:$0xff]
  %v91 = vld [vmem:[%s1 + $0x238] sm:$0xff]
  %v92 = vld [vmem:[%s1 + $0x240] sm:$0xff]
  %v93 = vld [vmem:[%s1 + $0x248] sm:$0xff]
  %v94 = vld [vmem:[%s1 + $0x250] sm:$0xff]
  %v95 = vld [vmem:[%s1 + $0x258] sm:$0xff]
  %v96 = vld [vmem:[%s1 + $0x260] sm:$0xff]
  %v97 = vld [vmem:[%s1 + $0x268] sm:$0xff]
  %v98 = vld [vmem:[%s1 + $0x270] sm:$0xff]
  %v99 = vld [vmem:[%s1 + $0x278] sm:$0xff]
  %v100 = vld [vmem:[%s1 + $0x280] sm:$0xff]
  %v101 = vld [vmem:[%s1 + $0x288] sm:$0xff]
  %v102 = vld [vmem:[%s1 + $0x290] sm:$0xff]
  %v103 = vld [vmem:[%s1 + $0x298] sm:$0xff]
  %v104 = vld [vmem:[%s1 + $0x2a0] sm:$0xff]
  %v105 = vld [vmem:[%s1 + $0x2a8] sm:$0xff]
  %v106 = vld [vmem:[%s1 + $0x2b0] sm:$0xff]
  %v107 = vld [vmem:[%s1 + $0x2b8] sm:$0xff]
  %v108 = vld [vmem:[%s1 + $0x2c0] sm:$0xff]
  %v109 = vld [vmem:[%s1 + $0x2c8] sm:$0xff]
  %v110 = vld [vmem:[%s1 + $0x2d0] sm:$0xff]
  %v111 = vld [vmem:[%s1 + $0x2d8] sm:$0xff]
  %v112 = vld [vmem:[%s1 + $0x2e0] sm:$0xff]
  %v113 = vld [vmem:[%s1 + $0x2e8] sm:$0xff]
  %v114 = vld [vmem:[%s1 + $0x2f0] sm:$0xff]
  %v115 = vld [vmem:[%s1 + $0x2f8] sm:$0xff]
  %v116 = vld [vmem:[%s1 + $0x300] sm:$0xff]
  %v117 = vld [vmem:[%s1 + $0x308] sm:$0xff]
  %v118 = vld [vmem:[%s1 + $0x310] sm:$0xff]
  %v119 = vld [vmem:[%s1 + $0x318] sm:$0xff]
  %v120 = vld [vmem:[%s1 + $0x320] sm:$0xff]
  %v121 = vld [vmem:[%s1 + $0x328] sm:$0xff]
  %v122 = vld [vmem:[%s1 + $0x330] sm:$0xff]
  %v123 = vld [vmem:[%s1 + $0x338] sm:$0xff]
  %v124 = vld [vmem:[%s1 + $0x340] sm:$0xff]
  %v125 = vld [vmem:[%s1 + $0x348] sm:$0xff]
  %v126 = vld [vmem:[%s1 + $0x350] sm:$0xff]
  %v127 = vld [vmem:[%s1 + $0x358] sm:$0xff]
  %v128 = vld [vmem:[%s1 + $0x360] sm:$0xff]
  %v129 = vld [vmem:[%s1 + $0x368] sm:$0xff]
  %v130 = vld [vmem:[%s1 + $0x370] sm:$0xff]
  %v131 = vld [vmem:[%s1 + $0x378] sm:$0xff]
  %v132 = vld [vmem:[%s1 + $0x380] sm:$0xff]
  %v133 = vld [vmem:[%s1 + $0x388] sm:$0xff]
  %v134 = vld [vmem:[%s1 + $0x390] sm:$0xff]
  %v135 = vld [vmem:[%s1 + $0x398] sm:$0xff]
  %v136 = vld [vmem:[%s1 + $0x3a0] sm:$0xff]
  %v137 = vld [vmem:[%s1 + $0x3a8] sm:$0xff]
  %v138 = vld [vmem:[%s1 + $0x3b0] sm:$0xff]
  %v139 = vld [vmem:[%s1 + $0x3b8] sm:$0xff]
  %v140 = vld [vmem:[%s1 + $0x3c0] sm:$0xff]
  %v141 = vld [vmem:[%s1 + $0x3c8] sm:$0xff]
  %v142 = vld [vmem:[%s1 + $0x3d0] sm:$0xff]
  %v143 = vld [vmem:[%s1 + $0x3d8] sm:$0xff]
  %v144 = vld [vmem:[%s1 + $0x3e0] sm:$0xff]
  %v145 = vld [vmem:[%s1 + $0x3e8] sm:$0xff]
  %v146 = vld [vmem:[%s1 + $0x3f0] sm:$0xff]
  %v147 = vld [vmem:[%s1 + $0x3f8] sm:$0xff]
  %v148 = vld [vmem:[%s1 + $0x400] sm:$0xff]
  %v149 = vld [vmem:[%s1 + $0x408] sm:$0xff]
  %v150 = vld [vmem:[%s1 + $0x410] sm:$0xff]
  %v151 = vld [vmem:[%s1 + $0x418] sm:$0xff]
  %v152 = vld [vmem:[%s1 + $0x420] sm:$0xff]
  %v153 = vld [vmem:[%s1 + $0x428] sm:$0xff]
  %v154 = vld [vmem:[%s1 + $0x430] sm:$0xff]
  %v155 = vld [vmem:[%s1 + $0x438] sm:$0xff]
  %v156 = vld [vmem:[%s1 + $0x440] sm:$0xff]
  %v157 = vld [vmem:[%s1 + $0x448] sm:$0xff]
  %v158 = vld [vmem:[%s1 + $0x450] sm:$0xff]
  %v159 = vld [vmem:[%s1 + $0x458] sm:$0xff]
  %v160 = vld [vmem:[%s1 + $0x460] sm:$0xff]
  %v161 = vld [vmem:[%s1 + $0x468] sm:$0xff]
  %v162 = vld [vmem:[%s1 + $0x470] sm:$0xff]
  %v163 = vld [vmem:[%s1 + $0x478] sm:$0xff]
  %v164 = vld [vmem:[%s1 + $0x480] sm:$0xff]
  %v165 = vld [vmem:[%s1 + $0x488] sm:$0xff]
  %v166 = vld [vmem:[%s1 + $0x490] sm:$0xff]
  %v167 = vld [vmem:[%s1 + $0x498] sm:$0xff]
  %v168 = vld [vmem:[%s1 + $0x4a0] sm:$0xff]
  %v169 = vld [vmem:[%s1 + $0x4a8] sm:$0xff]
  %v170 = vld [vmem:[%s1 + $0x4b0] sm:$0xff]
  %v171 = vld [vmem:[%s1 + $0x4b8] sm:$0xff]
  %v172 = vld [vmem:[%s1 + $0x4c0] sm:$0xff]
  %v173 = vld [vmem:[%s1 + $0x4c8] sm:$0xff]
  %v174 = vld [vmem:[%s1 + $0x4d0] sm:$0xff]
  %v175 = vld [vmem:[%s1 + $0x4d8] sm:$0xff]
  %v176 = vld [vmem:[%s1 + $0x4e0] sm:$0xff]
  %v177 = vld [vmem:[%s1 + $0x4e8] sm:$0xff]
  %v178 = vld [vmem:[%s1 + $0x4f0] sm:$0xff]
  %v179 = vld [vmem:[%s1 + $0x4f8] sm:$0xff]
  %v180 = vld [vmem:[%s1 + $0x500] sm:$0xff]
  %v181 = vld [vmem:[%s1 + $0x508] sm:$0xff]
  %v182 = vld [vmem:[%s1 + $0x510] sm:$0xff]
  %v183 = vld [vmem:[%s1 + $0x518] sm:$0xff]
  %v184 = vld [vmem:[%s1 + $0x520] sm:$0xff]
  %v185 = vld [vmem:[%s1 + $0x528] sm:$0xff]
  %v186 = vld [vmem:[%s1 + $0x530] sm:$0xff]
  %v187 = vld [vmem:[%s1 + $0x538] sm:$0xff]
  %v188 = vld [vmem:[%s1 + $0x540] sm:$0xff]
  %v189 = vld [vmem:[%s1 + $0x548] sm:$0xff]
  %v190 = vld [vmem:[%s1 + $0x550] sm:$0xff]
  %v191 = vld [vmem:[%s1 + $0x558] sm:$0xff]
  %v192 = vld [vmem:[%s1 + $0x560] sm:$0xff]
  %v193 = vld [vmem:[%s1 + $0x568] sm:$0xff]
  %v194 = vld [vmem:[%s1 + $0x570] sm:$0xff]
  %v195 = vld [vmem:[%s1 + $0x578] sm:$0xff]
  %v196 = vld [vmem:[%s1 + $0x580] sm:$0xff]
  %v197 = vld [vmem:[%s1 + $0x588] sm:$0xff]
  %v198 = vld [vmem:[%s1 + $0x590] sm:$0xff]
  %v199 = vld [vmem:[%s1 + $0x598] sm:$0xff]
  %v200 = vld [vmem:[%s1 + $0x5a0] sm:$0xff]
  %v201 = vld [vmem:[%s1 + $0x5a8] sm:$0xff]
  %v202 = vld [vmem:[%s1 + $0x5b0] sm:$0xff]
  %v203 = vld [vmem:[%s1 + $0x5b8] sm:$0xff]
  %v204 = vld [vmem:[%s1 + $0x5c0] sm:$0xff]
  %v205 = vld [vmem:[%s1 + $0x5c8] sm:$0xff]
  %v206 = vld [vmem:[%s1 + $0x5d0] sm:$0xff]
  %v207 = vld [vmem:[%s1 + $0x5d8] sm:$0xff]
  %v208 = vld [vmem:[%s1 + $0x5e0] sm:$0xff]
  %v209 = vld [vmem:[%s1 + $0x5e8] sm:$0xff]
  %v210 = vld [vmem:[%s1 + $0x5f0] sm:$0xff]
  %v211 = vld [vmem:[%s1 + $0x5f8] sm:$0xff]
  %v212 = vld [vmem:[%s1 + $0x600] sm:$0xff]
  %v213 = vld [vmem:[%s1 + $0x608] sm:$0xff]
  %v214 = vld [vmem:[%s1 + $0x610] sm:$0xff]
  %v215 = vld [vmem:[%s1 + $0x618] sm:$0xff]
  %v216 = vld [vmem:[%s1 + $0x620] sm:$0xff]
  %v217 = vld [vmem:[%s1 + $0x628] sm:$0xff]
  %v218 = vld [vmem:[%s1 + $0x630] sm:$0xff]
  %v219 = vld [vmem:[%s1 + $0x638] sm:$0xff]
  %v220 = vld [vmem:[%s1 + $0x640] sm:$0xff]
  %v221 = vld [vmem:[%s1 + $0x648] sm:$0xff]
  %v222 = vld [vmem:[%s1 + $0x650] sm:$0xff]
  %v223 = vld [vmem:[%s1 + $0x658] sm:$0xff]
  %v224 = vld [vmem:[%s1 + $0x660] sm:$0xff]
  %v225 = vld [vmem:[%s1 + $0x668] sm:$0xff]
  %v226 = vld [vmem:[%s1 + $0x670] sm:$0xff]
  %v227 = vld [vmem:[%s1 + $0x678] sm:$0xff]
  %v228 = vld [vmem:[%s1 + $0x680] sm:$0xff]
  %v229 = vld [vmem:[%s1 + $0x688] sm:$0xff]
  %v230 = vld [vmem:[%s1 + $0x690] sm:$0xff]
  %v231 = vld [vmem:[%s1 + $0x698] sm:$0xff]
  %v232 = vld [vmem:[%s1 + $0x6a0] sm:$0xff]
  %v233 = vld [vmem:[%s1 + $0x6a8] sm:$0xff]
  %v234 = vld [vmem:[%s1 + $0x6b0] sm:$0xff]
  %v235 = vld [vmem:[%s1 + $0x6b8] sm:$0xff]
  %v236 = vld [vmem:[%s1 + $0x6c0] sm:$0xff]
  %v237 = vld [vmem:[%s1 + $0x6c8] sm:$0xff]
  %v238 = vld [vmem:[%s1 + $0x6d0] sm:$0xff]
  %v239 = vld [vmem:[%s1 + $0x6d8] sm:$0xff]
  %v240 = vld [vmem:[%s1 + $0x6e0] sm:$0xff]
  %v241 = vld [vmem:[%s1 + $0x6e8] sm:$0xff]
  %v242 = vld [vmem:[%s1 + $0x6f0] sm:$0xff]
  %v243 = vld [vmem:[%s1 + $0x6f8] sm:$0xff]
  %v244 = vld [vmem:[%s1 + $0x700] sm:$0xff]
  %v245 = vld [vmem:[%s1 + $0x708] sm:$0xff]
  %v246 = vld [vmem:[%s1 + $0x710] sm:$0xff]
  %v247 = vld [vmem:[%s1 + $0x718] sm:$0xff]
  %v248 = vld [vmem:[%s1 + $0x720] sm:$0xff]
  %v249 = vld [vmem:[%s1 + $0x728] sm:$0xff]
  %v250 = vld [vmem:[%s1 + $0x730] sm:$0xff]
  %v251 = vld [vmem:[%s1 + $0x738] sm:$0xff]
  %v252 = vld [vmem:[%s1 + $0x740] sm:$0xff]
  %v253 = vld [vmem:[%s1 + $0x748] sm:$0xff]
  %v254 = vld [vmem:[%s1 + $0x750] sm:$0xff]
  %v255 = vld [vmem:[%s1 + $0x758] sm:$0xff]
  %v256 = vld [vmem:[%s1 + $0x760] sm:$0xff]
  %v257 = vld [vmem:[%s1 + $0x768] sm:$0xff]
  %v258 = vld [vmem:[%s1 + $0x770] sm:$0xff]
  %v259 = vld [vmem:[%s1 + $0x778] sm:$0xff]
  %v260 = vld [vmem:[%s1 + $0x780] sm:$0xff]
  %v261 = vld [vmem:[%s1 + $0x788] sm:$0xff]
  %v262 = vld [vmem:[%s1 + $0x790] sm:$0xff]
  %v263 = vld [vmem:[%s1 + $0x798] sm:$0xff]
  %v264 = vld [vmem:[%s1 + $0x7a0] sm:$0xff]
  %v265 = vld [vmem:[%s1 + $0x7a8] sm:$0xff]
  %v266 = vld [vmem:[%s1 + $0x7b0] sm:$0xff]
  %v267 = vld [vmem:[%s1 + $0x7b8] sm:$0xff]
  %v268 = vld [vmem:[%s1 + $0x7c0] sm:$0xff]
  %v269 = vld [vmem:[%s1 + $0x7c8] sm:$0xff]
  %v270 = vld [vmem:[%s1 + $0x7d0] sm:$0xff]
  %v271 = vld [vmem:[%s1 + $0x7d8] sm:$0xff]
  %v272 = vld [vmem:[%s1 + $0x7e0] sm:$0xff]
  %v273 = vld [vmem:[%s1 + $0x7e8] sm:$0xff]
  %v274 = vld [vmem:[%s1 + $0x7f0] sm:$0xff]
  %v275 = vld [vmem:[%s1 + $0x7f8] sm:$0xff]
  %v276 = vld [vmem:[%s2] sm:$0x3]
  %v277 = vld [vmem:[%s0] sm:$0xff]
  %v278 = vld [vmem:[%s0 + $0x8] sm:$0xff]
  %v279 = vld [vmem:[%s0 + $0x10] sm:$0xff]
  %v280 = vld [vmem:[%s0 + $0x18] sm:$0xff]
  %v281 = vld [vmem:[%s0 + $0x20] sm:$0xff]
  %v282 = vld [vmem:[%s0 + $0x28] sm:$0xff]
  %v283 = vld [vmem:[%s0 + $0x30] sm:$0xff]
  %v284 = vld [vmem:[%s0 + $0x38] sm:$0xff]
  %v286 = vperm.slane %v276, 0
  %v287 = vperm.slane %v276, 1
  %v298 = vunpack.c.l.b16 %v277
  %v299 = vunpack.c.h.b16 %v277
  %v300 = vunpack.c.l.b16 %v278
  %v301 = vunpack.c.h.b16 %v278
  %v302 = vunpack.c.l.b16 %v279
  %v303 = vunpack.c.h.b16 %v279
  %v304 = vunpack.c.l.b16 %v280
  %v305 = vunpack.c.h.b16 %v280
  %v306 = vunpack.c.l.b16 %v281
  %v307 = vunpack.c.h.b16 %v281
  %v308 = vunpack.c.l.b16 %v282
  %v309 = vunpack.c.h.b16 %v282
  %v310 = vunpack.c.l.b16 %v283
  %v311 = vunpack.c.h.b16 %v283
  %v312 = vunpack.c.l.b16 %v284
  %v313 = vunpack.c.h.b16 %v284
  %v314 = vpack.c.b16 %v298, %v298
  %v315 = vpack.c.b16 %v299, %v299
  %v316 = vpack.c.b16 %v300, %v300
  %v317 = vpack.c.b16 %v301, %v301
  %v318 = vpack.c.b16 %v302, %v302
  %v319 = vpack.c.b16 %v303, %v303
  %v320 = vpack.c.b16 %v304, %v304
  %v321 = vpack.c.b16 %v305, %v305
  %v322 = vpack.c.b16 %v306, %v306
  %v323 = vpack.c.b16 %v307, %v307
  %v324 = vpack.c.b16 %v308, %v308
  %v325 = vpack.c.b16 %v309, %v309
  %v326 = vpack.c.b16 %v310, %v310
  %v327 = vpack.c.b16 %v311, %v311
  %v328 = vpack.c.b16 %v312, %v312
  %v329 = vpack.c.b16 %v313, %v313
  %v602 = vunpack.c.l.b16 %v20
  %v603 = vunpack.c.h.b16 %v20
  %v604 = vunpack.c.l.b16 %v21
  %v605 = vunpack.c.h.b16 %v21
  %v606 = vunpack.c.l.b16 %v22
  %v607 = vunpack.c.h.b16 %v22
  %v608 = vunpack.c.l.b16 %v23
  %v609 = vunpack.c.h.b16 %v23
  %v610 = vunpack.c.l.b16 %v24
  %v611 = vunpack.c.h.b16 %v24
  %v612 = vunpack.c.l.b16 %v25
  %v613 = vunpack.c.h.b16 %v25
  %v614 = vunpack.c.l.b16 %v26
  %v615 = vunpack.c.h.b16 %v26
  %v616 = vunpack.c.l.b16 %v27
  %v617 = vunpack.c.h.b16 %v27
  %v618 = vunpack.c.l.b16 %v28
  %v619 = vunpack.c.h.b16 %v28
  %v620 = vunpack.c.l.b16 %v29
  %v621 = vunpack.c.h.b16 %v29
  %v622 = vunpack.c.l.b16 %v30
  %v623 = vunpack.c.h.b16 %v30
  %v624 = vunpack.c.l.b16 %v31
  %v625 = vunpack.c.h.b16 %v31
  %v626 = vunpack.c.l.b16 %v32
  %v627 = vunpack.c.h.b16 %v32
  %v628 = vunpack.c.l.b16 %v33
  %v629 = vunpack.c.h.b16 %v33
  %v630 = vunpack.c.l.b16 %v34
  %v631 = vunpack.c.h.b16 %v34
  %v632 = vunpack.c.l.b16 %v35
  %v633 = vunpack.c.h.b16 %v35
  %v634 = vunpack.c.l.b16 %v36
  %v635 = vunpack.c.h.b16 %v36
  %v636 = vunpack.c.l.b16 %v37
  %v637 = vunpack.c.h.b16 %v37
  %v638 = vunpack.c.l.b16 %v38
  %v639 = vunpack.c.h.b16 %v38
  %v640 = vunpack.c.l.b16 %v39
  %v641 = vunpack.c.h.b16 %v39
  %v642 = vunpack.c.l.b16 %v40
  %v643 = vunpack.c.h.b16 %v40
  %v644 = vunpack.c.l.b16 %v41
  %v645 = vunpack.c.h.b16 %v41
  %v646 = vunpack.c.l.b16 %v42
  %v647 = vunpack.c.h.b16 %v42
  %v648 = vunpack.c.l.b16 %v43
  %v649 = vunpack.c.h.b16 %v43
  %v650 = vunpack.c.l.b16 %v44
  %v651 = vunpack.c.h.b16 %v44
  %v652 = vunpack.c.l.b16 %v45
  %v653 = vunpack.c.h.b16 %v45
  %v654 = vunpack.c.l.b16 %v46
  %v655 = vunpack.c.h.b16 %v46
  %v656 = vunpack.c.l.b16 %v47
  %v657 = vunpack.c.h.b16 %v47
  %v658 = vunpack.c.l.b16 %v48
  %v659 = vunpack.c.h.b16 %v48
  %v660 = vunpack.c.l.b16 %v49
  %v661 = vunpack.c.h.b16 %v49
  %v662 = vunpack.c.l.b16 %v50
  %v663 = vunpack.c.h.b16 %v50
  %v664 = vunpack.c.l.b16 %v51
  %v665 = vunpack.c.h.b16 %v51
  %v666 = vunpack.c.l.b16 %v52
  %v667 = vunpack.c.h.b16 %v52
  %v668 = vunpack.c.l.b16 %v53
  %v669 = vunpack.c.h.b16 %v53
  %v670 = vunpack.c.l.b16 %v54
  %v671 = vunpack.c.h.b16 %v54
  %v672 = vunpack.c.l.b16 %v55
  %v673 = vunpack.c.h.b16 %v55
  %v674 = vunpack.c.l.b16 %v56
  %v675 = vunpack.c.h.b16 %v56
  %v676 = vunpack.c.l.b16 %v57
  %v677 = vunpack.c.h.b16 %v57
  %v678 = vunpack.c.l.b16 %v58
  %v679 = vunpack.c.h.b16 %v58
  %v680 = vunpack.c.l.b16 %v59
  %v681 = vunpack.c.h.b16 %v59
  %v682 = vunpack.c.l.b16 %v60
  %v683 = vunpack.c.h.b16 %v60
  %v684 = vunpack.c.l.b16 %v61
  %v685 = vunpack.c.h.b16 %v61
  %v686 = vunpack.c.l.b16 %v62
  %v687 = vunpack.c.h.b16 %v62
  %v688 = vunpack.c.l.b16 %v63
  %v689 = vunpack.c.h.b16 %v63
  %v690 = vunpack.c.l.b16 %v64
  %v691 = vunpack.c.h.b16 %v64
  %v692 = vunpack.c.l.b16 %v65
  %v693 = vunpack.c.h.b16 %v65
  %v694 = vunpack.c.l.b16 %v66
  %v695 = vunpack.c.h.b16 %v66
  %v696 = vunpack.c.l.b16 %v67
  %v697 = vunpack.c.h.b16 %v67
  %v698 = vunpack.c.l.b16 %v68
  %v699 = vunpack.c.h.b16 %v68
  %v700 = vunpack.c.l.b16 %v69
  %v701 = vunpack.c.h.b16 %v69
  %v702 = vunpack.c.l.b16 %v70
  %v703 = vunpack.c.h.b16 %v70
  %v704 = vunpack.c.l.b16 %v71
  %v705 = vunpack.c.h.b16 %v71
  %v706 = vunpack.c.l.b16 %v72
  %v707 = vunpack.c.h.b16 %v72
  %v708 = vunpack.c.l.b16 %v73
  %v709 = vunpack.c.h.b16 %v73
  %v710 = vunpack.c.l.b16 %v74
  %v711 = vunpack.c.h.b16 %v74
  %v712 = vunpack.c.l.b16 %v75
  %v713 = vunpack.c.h.b16 %v75
  %v714 = vunpack.c.l.b16 %v76
  %v715 = vunpack.c.h.b16 %v76
  %v716 = vunpack.c.l.b16 %v77
  %v717 = vunpack.c.h.b16 %v77
  %v718 = vunpack.c.l.b16 %v78
  %v719 = vunpack.c.h.b16 %v78
  %v720 = vunpack.c.l.b16 %v79
  %v721 = vunpack.c.h.b16 %v79
  %v722 = vunpack.c.l.b16 %v80
  %v723 = vunpack.c.h.b16 %v80
  %v724 = vunpack.c.l.b16 %v81
  %v725 = vunpack.c.h.b16 %v81
  %v726 = vunpack.c.l.b16 %v82
  %v727 = vunpack.c.h.b16 %v82
  %v728 = vunpack.c.l.b16 %v83
  %v729 = vunpack.c.h.b16 %v83
  %v730 = vunpack.c.l.b16 %v84
  %v731 = vunpack.c.h.b16 %v84
  %v732 = vunpack.c.l.b16 %v85
  %v733 = vunpack.c.h.b16 %v85
  %v734 = vunpack.c.l.b16 %v86
  %v735 = vunpack.c.h.b16 %v86
  %v736 = vunpack.c.l.b16 %v87
  %v737 = vunpack.c.h.b16 %v87
  %v738 = vunpack.c.l.b16 %v88
  %v739 = vunpack.c.h.b16 %v88
  %v740 = vunpack.c.l.b16 %v89
  %v741 = vunpack.c.h.b16 %v89
  %v742 = vunpack.c.l.b16 %v90
  %v743 = vunpack.c.h.b16 %v90
  %v744 = vunpack.c.l.b16 %v91
  %v745 = vunpack.c.h.b16 %v91
  %v746 = vunpack.c.l.b16 %v92
  %v747 = vunpack.c.h.b16 %v92
  %v748 = vunpack.c.l.b16 %v93
  %v749 = vunpack.c.h.b16 %v93
  %v750 = vunpack.c.l.b16 %v94
  %v751 = vunpack.c.h.b16 %v94
  %v752 = vunpack.c.l.b16 %v95
  %v753 = vunpack.c.h.b16 %v95
  %v754 = vunpack.c.l.b16 %v96
  %v755 = vunpack.c.h.b16 %v96
  %v756 = vunpack.c.l.b16 %v97
  %v757 = vunpack.c.h.b16 %v97
  %v758 = vunpack.c.l.b16 %v98
  %v759 = vunpack.c.h.b16 %v98
  %v760 = vunpack.c.l.b16 %v99
  %v761 = vunpack.c.h.b16 %v99
  %v762 = vunpack.c.l.b16 %v100
  %v763 = vunpack.c.h.b16 %v100
  %v764 = vunpack.c.l.b16 %v101
  %v765 = vunpack.c.h.b16 %v101
  %v766 = vunpack.c.l.b16 %v102
  %v767 = vunpack.c.h.b16 %v102
  %v768 = vunpack.c.l.b16 %v103
  %v769 = vunpack.c.h.b16 %v103
  %v770 = vunpack.c.l.b16 %v104
  %v771 = vunpack.c.h.b16 %v104
  %v772 = vunpack.c.l.b16 %v105
  %v773 = vunpack.c.h.b16 %v105
  %v774 = vunpack.c.l.b16 %v106
  %v775 = vunpack.c.h.b16 %v106
  %v776 = vunpack.c.l.b16 %v107
  %v777 = vunpack.c.h.b16 %v107
  %v778 = vunpack.c.l.b16 %v108
  %v779 = vunpack.c.h.b16 %v108
  %v780 = vunpack.c.l.b16 %v109
  %v781 = vunpack.c.h.b16 %v109
  %v782 = vunpack.c.l.b16 %v110
  %v783 = vunpack.c.h.b16 %v110
  %v784 = vunpack.c.l.b16 %v111
  %v785 = vunpack.c.h.b16 %v111
  %v786 = vunpack.c.l.b16 %v112
  %v787 = vunpack.c.h.b16 %v112
  %v788 = vunpack.c.l.b16 %v113
  %v789 = vunpack.c.h.b16 %v113
  %v790 = vunpack.c.l.b16 %v114
  %v791 = vunpack.c.h.b16 %v114
  %v792 = vunpack.c.l.b16 %v115
  %v793 = vunpack.c.h.b16 %v115
  %v794 = vunpack.c.l.b16 %v116
  %v795 = vunpack.c.h.b16 %v116
  %v796 = vunpack.c.l.b16 %v117
  %v797 = vunpack.c.h.b16 %v117
  %v798 = vunpack.c.l.b16 %v118
  %v799 = vunpack.c.h.b16 %v118
  %v800 = vunpack.c.l.b16 %v119
  %v801 = vunpack.c.h.b16 %v119
  %v802 = vunpack.c.l.b16 %v120
  %v803 = vunpack.c.h.b16 %v120
  %v804 = vunpack.c.l.b16 %v121
  %v805 = vunpack.c.h.b16 %v121
  %v806 = vunpack.c.l.b16 %v122
  %v807 = vunpack.c.h.b16 %v122
  %v808 = vunpack.c.l.b16 %v123
  %v809 = vunpack.c.h.b16 %v123
  %v810 = vunpack.c.l.b16 %v124
  %v811 = vunpack.c.h.b16 %v124
  %v812 = vunpack.c.l.b16 %v125
  %v813 = vunpack.c.h.b16 %v125
  %v814 = vunpack.c.l.b16 %v126
  %v815 = vunpack.c.h.b16 %v126
  %v816 = vunpack.c.l.b16 %v127
  %v817 = vunpack.c.h.b16 %v127
  %v818 = vunpack.c.l.b16 %v128
  %v819 = vunpack.c.h.b16 %v128
  %v820 = vunpack.c.l.b16 %v129
  %v821 = vunpack.c.h.b16 %v129
  %v822 = vunpack.c.l.b16 %v130
  %v823 = vunpack.c.h.b16 %v130
  %v824 = vunpack.c.l.b16 %v131
  %v825 = vunpack.c.h.b16 %v131
  %v826 = vunpack.c.l.b16 %v132
  %v827 = vunpack.c.h.b16 %v132
  %v828 = vunpack.c.l.b16 %v133
  %v829 = vunpack.c.h.b16 %v133
  %v830 = vunpack.c.l.b16 %v134
  %v831 = vunpack.c.h.b16 %v134
  %v832 = vunpack.c.l.b16 %v135
  %v833 = vunpack.c.h.b16 %v135
  %v834 = vunpack.c.l.b16 %v136
  %v835 = vunpack.c.h.b16 %v136
  %v836 = vunpack.c.l.b16 %v137
  %v837 = vunpack.c.h.b16 %v137
  %v838 = vunpack.c.l.b16 %v138
  %v839 = vunpack.c.h.b16 %v138
  %v840 = vunpack.c.l.b16 %v139
  %v841 = vunpack.c.h.b16 %v139
  %v842 = vunpack.c.l.b16 %v140
  %v843 = vunpack.c.h.b16 %v140
  %v844 = vunpack.c.l.b16 %v141
  %v845 = vunpack.c.h.b16 %v141
  %v846 = vunpack.c.l.b16 %v142
  %v847 = vunpack.c.h.b16 %v142
  %v848 = vunpack.c.l.b16 %v143
  %v849 = vunpack.c.h.b16 %v143
  %v850 = vunpack.c.l.b16 %v144
  %v851 = vunpack.c.h.b16 %v144
  %v852 = vunpack.c.l.b16 %v145
  %v853 = vunpack.c.h.b16 %v145
  %v854 = vunpack.c.l.b16 %v146
  %v855 = vunpack.c.h.b16 %v146
  %v856 = vunpack.c.l.b16 %v147
  %v857 = vunpack.c.h.b16 %v147
  %v858 = vunpack.c.l.b16 %v148
  %v859 = vunpack.c.h.b16 %v148
  %v860 = vunpack.c.l.b16 %v149
  %v861 = vunpack.c.h.b16 %v149
  %v862 = vunpack.c.l.b16 %v150
  %v863 = vunpack.c.h.b16 %v150
  %v864 = vunpack.c.l.b16 %v151
  %v865 = vunpack.c.h.b16 %v151
  %v866 = vunpack.c.l.b16 %v152
  %v867 = vunpack.c.h.b16 %v152
  %v868 = vunpack.c.l.b16 %v153
  %v869 = vunpack.c.h.b16 %v153
  %v870 = vunpack.c.l.b16 %v154
  %v871 = vunpack.c.h.b16 %v154
  %v872 = vunpack.c.l.b16 %v155
  %v873 = vunpack.c.h.b16 %v155
  %v874 = vunpack.c.l.b16 %v156
  %v875 = vunpack.c.h.b16 %v156
  %v876 = vunpack.c.l.b16 %v157
  %v877 = vunpack.c.h.b16 %v157
  %v878 = vunpack.c.l.b16 %v158
  %v879 = vunpack.c.h.b16 %v158
  %v880 = vunpack.c.l.b16 %v159
  %v881 = vunpack.c.h.b16 %v159
  %v882 = vunpack.c.l.b16 %v160
  %v883 = vunpack.c.h.b16 %v160
  %v884 = vunpack.c.l.b16 %v161
  %v885 = vunpack.c.h.b16 %v161
  %v886 = vunpack.c.l.b16 %v162
  %v887 = vunpack.c.h.b16 %v162
  %v888 = vunpack.c.l.b16 %v163
  %v889 = vunpack.c.h.b16 %v163
  %v890 = vunpack.c.l.b16 %v164
  %v891 = vunpack.c.h.b16 %v164
  %v892 = vunpack.c.l.b16 %v165
  %v893 = vunpack.c.h.b16 %v165
  %v894 = vunpack.c.l.b16 %v166
  %v895 = vunpack.c.h.b16 %v166
  %v896 = vunpack.c.l.b16 %v167
  %v897 = vunpack.c.h.b16 %v167
  %v898 = vunpack.c.l.b16 %v168
  %v899 = vunpack.c.h.b16 %v168
  %v900 = vunpack.c.l.b16 %v169
  %v901 = vunpack.c.h.b16 %v169
  %v902 = vunpack.c.l.b16 %v170
  %v903 = vunpack.c.h.b16 %v170
  %v904 = vunpack.c.l.b16 %v171
  %v905 = vunpack.c.h.b16 %v171
  %v906 = vunpack.c.l.b16 %v172
  %v907 = vunpack.c.h.b16 %v172
  %v908 = vunpack.c.l.b16 %v173
  %v909 = vunpack.c.h.b16 %v173
  %v910 = vunpack.c.l.b16 %v174
  %v911 = vunpack.c.h.b16 %v174
  %v912 = vunpack.c.l.b16 %v175
  %v913 = vunpack.c.h.b16 %v175
  %v914 = vunpack.c.l.b16 %v176
  %v915 = vunpack.c.h.b16 %v176
  %v916 = vunpack.c.l.b16 %v177
  %v917 = vunpack.c.h.b16 %v177
  %v918 = vunpack.c.l.b16 %v178
  %v919 = vunpack.c.h.b16 %v178
  %v920 = vunpack.c.l.b16 %v179
  %v921 = vunpack.c.h.b16 %v179
  %v922 = vunpack.c.l.b16 %v180
  %v923 = vunpack.c.h.b16 %v180
  %v924 = vunpack.c.l.b16 %v181
  %v925 = vunpack.c.h.b16 %v181
  %v926 = vunpack.c.l.b16 %v182
  %v927 = vunpack.c.h.b16 %v182
  %v928 = vunpack.c.l.b16 %v183
  %v929 = vunpack.c.h.b16 %v183
  %v930 = vunpack.c.l.b16 %v184
  %v931 = vunpack.c.h.b16 %v184
  %v932 = vunpack.c.l.b16 %v185
  %v933 = vunpack.c.h.b16 %v185
  %v934 = vunpack.c.l.b16 %v186
  %v935 = vunpack.c.h.b16 %v186
  %v936 = vunpack.c.l.b16 %v187
  %v937 = vunpack.c.h.b16 %v187
  %v938 = vunpack.c.l.b16 %v188
  %v939 = vunpack.c.h.b16 %v188
  %v940 = vunpack.c.l.b16 %v189
  %v941 = vunpack.c.h.b16 %v189
  %v942 = vunpack.c.l.b16 %v190
  %v943 = vunpack.c.h.b16 %v190
  %v944 = vunpack.c.l.b16 %v191
  %v945 = vunpack.c.h.b16 %v191
  %v946 = vunpack.c.l.b16 %v192
  %v947 = vunpack.c.h.b16 %v192
  %v948 = vunpack.c.l.b16 %v193
  %v949 = vunpack.c.h.b16 %v193
  %v950 = vunpack.c.l.b16 %v194
  %v951 = vunpack.c.h.b16 %v194
  %v952 = vunpack.c.l.b16 %v195
  %v953 = vunpack.c.h.b16 %v195
  %v954 = vunpack.c.l.b16 %v196
  %v955 = vunpack.c.h.b16 %v196
  %v956 = vunpack.c.l.b16 %v197
  %v957 = vunpack.c.h.b16 %v197
  %v958 = vunpack.c.l.b16 %v198
  %v959 = vunpack.c.h.b16 %v198
  %v960 = vunpack.c.l.b16 %v199
  %v961 = vunpack.c.h.b16 %v199
  %v962 = vunpack.c.l.b16 %v200
  %v963 = vunpack.c.h.b16 %v200
  %v964 = vunpack.c.l.b16 %v201
  %v965 = vunpack.c.h.b16 %v201
  %v966 = vunpack.c.l.b16 %v202
  %v967 = vunpack.c.h.b16 %v202
  %v968 = vunpack.c.l.b16 %v203
  %v969 = vunpack.c.h.b16 %v203
  %v970 = vunpack.c.l.b16 %v204
  %v971 = vunpack.c.h.b16 %v204
  %v972 = vunpack.c.l.b16 %v205
  %v973 = vunpack.c.h.b16 %v205
  %v974 = vunpack.c.l.b16 %v206
  %v975 = vunpack.c.h.b16 %v206
  %v976 = vunpack.c.l.b16 %v207
  %v977 = vunpack.c.h.b16 %v207
  %v978 = vunpack.c.l.b16 %v208
  %v979 = vunpack.c.h.b16 %v208
  %v980 = vunpack.c.l.b16 %v209
  %v981 = vunpack.c.h.b16 %v209
  %v982 = vunpack.c.l.b16 %v210
  %v983 = vunpack.c.h.b16 %v210
  %v984 = vunpack.c.l.b16 %v211
  %v985 = vunpack.c.h.b16 %v211
  %v986 = vunpack.c.l.b16 %v212
  %v987 = vunpack.c.h.b16 %v212
  %v988 = vunpack.c.l.b16 %v213
  %v989 = vunpack.c.h.b16 %v213
  %v990 = vunpack.c.l.b16 %v214
  %v991 = vunpack.c.h.b16 %v214
  %v992 = vunpack.c.l.b16 %v215
  %v993 = vunpack.c.h.b16 %v215
  %v994 = vunpack.c.l.b16 %v216
  %v995 = vunpack.c.h.b16 %v216
  %v996 = vunpack.c.l.b16 %v217
  %v997 = vunpack.c.h.b16 %v217
  %v998 = vunpack.c.l.b16 %v218
  %v999 = vunpack.c.h.b16 %v218
  %v1000 = vunpack.c.l.b16 %v219
  %v1001 = vunpack.c.h.b16 %v219
  %v1002 = vunpack.c.l.b16 %v220
  %v1003 = vunpack.c.h.b16 %v220
  %v1004 = vunpack.c.l.b16 %v221
  %v1005 = vunpack.c.h.b16 %v221
  %v1006 = vunpack.c.l.b16 %v222
  %v1007 = vunpack.c.h.b16 %v222
  %v1008 = vunpack.c.l.b16 %v223
  %v1009 = vunpack.c.h.b16 %v223
  %v1010 = vunpack.c.l.b16 %v224
  %v1011 = vunpack.c.h.b16 %v224
  %v1012 = vunpack.c.l.b16 %v225
  %v1013 = vunpack.c.h.b16 %v225
  %v1014 = vunpack.c.l.b16 %v226
  %v1015 = vunpack.c.h.b16 %v226
  %v1016 = vunpack.c.l.b16 %v227
  %v1017 = vunpack.c.h.b16 %v227
  %v1018 = vunpack.c.l.b16 %v228
  %v1019 = vunpack.c.h.b16 %v228
  %v1020 = vunpack.c.l.b16 %v229
  %v1021 = vunpack.c.h.b16 %v229
  %v1022 = vunpack.c.l.b16 %v230
  %v1023 = vunpack.c.h.b16 %v230
  %v1024 = vunpack.c.l.b16 %v231
  %v1025 = vunpack.c.h.b16 %v231
  %v1026 = vunpack.c.l.b16 %v232
  %v1027 = vunpack.c.h.b16 %v232
  %v1028 = vunpack.c.l.b16 %v233
  %v1029 = vunpack.c.h.b16 %v233
  %v1030 = vunpack.c.l.b16 %v234
  %v1031 = vunpack.c.h.b16 %v234
  %v1032 = vunpack.c.l.b16 %v235
  %v1033 = vunpack.c.h.b16 %v235
  %v1034 = vunpack.c.l.b16 %v236
  %v1035 = vunpack.c.h.b16 %v236
  %v1036 = vunpack.c.l.b16 %v237
  %v1037 = vunpack.c.h.b16 %v237
  %v1038 = vunpack.c.l.b16 %v238
  %v1039 = vunpack.c.h.b16 %v238
  %v1040 = vunpack.c.l.b16 %v239
  %v1041 = vunpack.c.h.b16 %v239
  %v1042 = vunpack.c.l.b16 %v240
  %v1043 = vunpack.c.h.b16 %v240
  %v1044 = vunpack.c.l.b16 %v241
  %v1045 = vunpack.c.h.b16 %v241
  %v1046 = vunpack.c.l.b16 %v242
  %v1047 = vunpack.c.h.b16 %v242
  %v1048 = vunpack.c.l.b16 %v243
  %v1049 = vunpack.c.h.b16 %v243
  %v1050 = vunpack.c.l.b16 %v244
  %v1051 = vunpack.c.h.b16 %v244
  %v1052 = vunpack.c.l.b16 %v245
  %v1053 = vunpack.c.h.b16 %v245
  %v1054 = vunpack.c.l.b16 %v246
  %v1055 = vunpack.c.h.b16 %v246
  %v1056 = vunpack.c.l.b16 %v247
  %v1057 = vunpack.c.h.b16 %v247
  %v1058 = vunpack.c.l.b16 %v248
  %v1059 = vunpack.c.h.b16 %v248
  %v1060 = vunpack.c.l.b16 %v249
  %v1061 = vunpack.c.h.b16 %v249
  %v1062 = vunpack.c.l.b16 %v250
  %v1063 = vunpack.c.h.b16 %v250
  %v1064 = vunpack.c.l.b16 %v251
  %v1065 = vunpack.c.h.b16 %v251
  %v1066 = vunpack.c.l.b16 %v252
  %v1067 = vunpack.c.h.b16 %v252
  %v1068 = vunpack.c.l.b16 %v253
  %v1069 = vunpack.c.h.b16 %v253
  %v1070 = vunpack.c.l.b16 %v254
  %v1071 = vunpack.c.h.b16 %v254
  %v1072 = vunpack.c.l.b16 %v255
  %v1073 = vunpack.c.h.b16 %v255
  %v1074 = vunpack.c.l.b16 %v256
  %v1075 = vunpack.c.h.b16 %v256
  %v1076 = vunpack.c.l.b16 %v257
  %v1077 = vunpack.c.h.b16 %v257
  %v1078 = vunpack.c.l.b16 %v258
  %v1079 = vunpack.c.h.b16 %v258
  %v1080 = vunpack.c.l.b16 %v259
  %v1081 = vunpack.c.h.b16 %v259
  %v1082 = vunpack.c.l.b16 %v260
  %v1083 = vunpack.c.h.b16 %v260
  %v1084 = vunpack.c.l.b16 %v261
  %v1085 = vunpack.c.h.b16 %v261
  %v1086 = vunpack.c.l.b16 %v262
  %v1087 = vunpack.c.h.b16 %v262
  %v1088 = vunpack.c.l.b16 %v263
  %v1089 = vunpack.c.h.b16 %v263
  %v1090 = vunpack.c.l.b16 %v264
  %v1091 = vunpack.c.h.b16 %v264
  %v1092 = vunpack.c.l.b16 %v265
  %v1093 = vunpack.c.h.b16 %v265
  %v1094 = vunpack.c.l.b16 %v266
  %v1095 = vunpack.c.h.b16 %v266
  %v1096 = vunpack.c.l.b16 %v267
  %v1097 = vunpack.c.h.b16 %v267
  %v1098 = vunpack.c.l.b16 %v268
  %v1099 = vunpack.c.h.b16 %v268
  %v1100 = vunpack.c.l.b16 %v269
  %v1101 = vunpack.c.h.b16 %v269
  %v1102 = vunpack.c.l.b16 %v270
  %v1103 = vunpack.c.h.b16 %v270
  %v1104 = vunpack.c.l.b16 %v271
  %v1105 = vunpack.c.h.b16 %v271
  %v1106 = vunpack.c.l.b16 %v272
  %v1107 = vunpack.c.h.b16 %v272
  %v1108 = vunpack.c.l.b16 %v273
  %v1109 = vunpack.c.h.b16 %v273
  %v1110 = vunpack.c.l.b16 %v274
  %v1111 = vunpack.c.h.b16 %v274
  %v1112 = vunpack.c.l.b16 %v275
  %v1113 = vunpack.c.h.b16 %v275
  %v1114 = vpack.c.b16 %v604, %v602
  %v1115 = vpack.c.b16 %v605, %v603
  %v1116 = vpack.c.b16 %v608, %v606
  %v1117 = vpack.c.b16 %v609, %v607
  %v1118 = vpack.c.b16 %v612, %v610
  %v1119 = vpack.c.b16 %v613, %v611
  %v1120 = vpack.c.b16 %v616, %v614
  %v1121 = vpack.c.b16 %v617, %v615
  %v1122 = vpack.c.b16 %v620, %v618
  %v1123 = vpack.c.b16 %v621, %v619
  %v1124 = vpack.c.b16 %v624, %v622
  %v1125 = vpack.c.b16 %v625, %v623
  %v1126 = vpack.c.b16 %v628, %v626
  %v1127 = vpack.c.b16 %v629, %v627
  %v1128 = vpack.c.b16 %v632, %v630
  %v1129 = vpack.c.b16 %v633, %v631
  %v1130 = vpack.c.b16 %v636, %v634
  %v1131 = vpack.c.b16 %v637, %v635
  %v1132 = vpack.c.b16 %v640, %v638
  %v1133 = vpack.c.b16 %v641, %v639
  %v1134 = vpack.c.b16 %v644, %v642
  %v1135 = vpack.c.b16 %v645, %v643
  %v1136 = vpack.c.b16 %v648, %v646
  %v1137 = vpack.c.b16 %v649, %v647
  %v1138 = vpack.c.b16 %v652, %v650
  %v1139 = vpack.c.b16 %v653, %v651
  %v1140 = vpack.c.b16 %v656, %v654
  %v1141 = vpack.c.b16 %v657, %v655
  %v1142 = vpack.c.b16 %v660, %v658
  %v1143 = vpack.c.b16 %v661, %v659
  %v1144 = vpack.c.b16 %v664, %v662
  %v1145 = vpack.c.b16 %v665, %v663
  %v1146 = vpack.c.b16 %v668, %v666
  %v1147 = vpack.c.b16 %v669, %v667
  %v1148 = vpack.c.b16 %v672, %v670
  %v1149 = vpack.c.b16 %v673, %v671
  %v1150 = vpack.c.b16 %v676, %v674
  %v1151 = vpack.c.b16 %v677, %v675
  %v1152 = vpack.c.b16 %v680, %v678
  %v1153 = vpack.c.b16 %v681, %v679
  %v1154 = vpack.c.b16 %v684, %v682
  %v1155 = vpack.c.b16 %v685, %v683
  %v1156 = vpack.c.b16 %v688, %v686
  %v1157 = vpack.c.b16 %v689, %v687
  %v1158 = vpack.c.b16 %v692, %v690
  %v1159 = vpack.c.b16 %v693, %v691
  %v1160 = vpack.c.b16 %v696, %v694
  %v1161 = vpack.c.b16 %v697, %v695
  %v1162 = vpack.c.b16 %v700, %v698
  %v1163 = vpack.c.b16 %v701, %v699
  %v1164 = vpack.c.b16 %v704, %v702
  %v1165 = vpack.c.b16 %v705, %v703
  %v1166 = vpack.c.b16 %v708, %v706
  %v1167 = vpack.c.b16 %v709, %v707
  %v1168 = vpack.c.b16 %v712, %v710
  %v1169 = vpack.c.b16 %v713, %v711
  %v1170 = vpack.c.b16 %v716, %v714
  %v1171 = vpack.c.b16 %v717, %v715
  %v1172 = vpack.c.b16 %v720, %v718
  %v1173 = vpack.c.b16 %v721, %v719
  %v1174 = vpack.c.b16 %v724, %v722
  %v1175 = vpack.c.b16 %v725, %v723
  %v1176 = vpack.c.b16 %v728, %v726
  %v1177 = vpack.c.b16 %v729, %v727
  %v1178 = vpack.c.b16 %v732, %v730
  %v1179 = vpack.c.b16 %v733, %v731
  %v1180 = vpack.c.b16 %v736, %v734
  %v1181 = vpack.c.b16 %v737, %v735
  %v1182 = vpack.c.b16 %v740, %v738
  %v1183 = vpack.c.b16 %v741, %v739
  %v1184 = vpack.c.b16 %v744, %v742
  %v1185 = vpack.c.b16 %v745, %v743
  %v1186 = vpack.c.b16 %v748, %v746
  %v1187 = vpack.c.b16 %v749, %v747
  %v1188 = vpack.c.b16 %v752, %v750
  %v1189 = vpack.c.b16 %v753, %v751
  %v1190 = vpack.c.b16 %v756, %v754
  %v1191 = vpack.c.b16 %v757, %v755
  %v1192 = vpack.c.b16 %v760, %v758
  %v1193 = vpack.c.b16 %v761, %v759
  %v1194 = vpack.c.b16 %v764, %v762
  %v1195 = vpack.c.b16 %v765, %v763
  %v1196 = vpack.c.b16 %v768, %v766
  %v1197 = vpack.c.b16 %v769, %v767
  %v1198 = vpack.c.b16 %v772, %v770
  %v1199 = vpack.c.b16 %v773, %v771
  %v1200 = vpack.c.b16 %v776, %v774
  %v1201 = vpack.c.b16 %v777, %v775
  %v1202 = vpack.c.b16 %v780, %v778
  %v1203 = vpack.c.b16 %v781, %v779
  %v1204 = vpack.c.b16 %v784, %v782
  %v1205 = vpack.c.b16 %v785, %v783
  %v1206 = vpack.c.b16 %v788, %v786
  %v1207 = vpack.c.b16 %v789, %v787
  %v1208 = vpack.c.b16 %v792, %v790
  %v1209 = vpack.c.b16 %v793, %v791
  %v1210 = vpack.c.b16 %v796, %v794
  %v1211 = vpack.c.b16 %v797, %v795
  %v1212 = vpack.c.b16 %v800, %v798
  %v1213 = vpack.c.b16 %v801, %v799
  %v1214 = vpack.c.b16 %v804, %v802
  %v1215 = vpack.c.b16 %v805, %v803
  %v1216 = vpack.c.b16 %v808, %v806
  %v1217 = vpack.c.b16 %v809, %v807
  %v1218 = vpack.c.b16 %v812, %v810
  %v1219 = vpack.c.b16 %v813, %v811
  %v1220 = vpack.c.b16 %v816, %v814
  %v1221 = vpack.c.b16 %v817, %v815
  %v1222 = vpack.c.b16 %v820, %v818
  %v1223 = vpack.c.b16 %v821, %v819
  %v1224 = vpack.c.b16 %v824, %v822
  %v1225 = vpack.c.b16 %v825, %v823
  %v1226 = vpack.c.b16 %v828, %v826
  %v1227 = vpack.c.b16 %v829, %v827
  %v1228 = vpack.c.b16 %v832, %v830
  %v1229 = vpack.c.b16 %v833, %v831
  %v1230 = vpack.c.b16 %v836, %v834
  %v1231 = vpack.c.b16 %v837, %v835
  %v1232 = vpack.c.b16 %v840, %v838
  %v1233 = vpack.c.b16 %v841, %v839
  %v1234 = vpack.c.b16 %v844, %v842
  %v1235 = vpack.c.b16 %v845, %v843
  %v1236 = vpack.c.b16 %v848, %v846
  %v1237 = vpack.c.b16 %v849, %v847
  %v1238 = vpack.c.b16 %v852, %v850
  %v1239 = vpack.c.b16 %v853, %v851
  %v1240 = vpack.c.b16 %v856, %v854
  %v1241 = vpack.c.b16 %v857, %v855
  %v1242 = vpack.c.b16 %v860, %v858
  %v1243 = vpack.c.b16 %v861, %v859
  %v1244 = vpack.c.b16 %v864, %v862
  %v1245 = vpack.c.b16 %v865, %v863
  %v1246 = vpack.c.b16 %v868, %v866
  %v1247 = vpack.c.b16 %v869, %v867
  %v1248 = vpack.c.b16 %v872, %v870
  %v1249 = vpack.c.b16 %v873, %v871
  %v1250 = vpack.c.b16 %v876, %v874
  %v1251 = vpack.c.b16 %v877, %v875
  %v1252 = vpack.c.b16 %v880, %v878
  %v1253 = vpack.c.b16 %v881, %v879
  %v1254 = vpack.c.b16 %v884, %v882
  %v1255 = vpack.c.b16 %v885, %v883
  %v1256 = vpack.c.b16 %v888, %v886
  %v1257 = vpack.c.b16 %v889, %v887
  %v1258 = vpack.c.b16 %v892, %v890
  %v1259 = vpack.c.b16 %v893, %v891
  %v1260 = vpack.c.b16 %v896, %v894
  %v1261 = vpack.c.b16 %v897, %v895
  %v1262 = vpack.c.b16 %v900, %v898
  %v1263 = vpack.c.b16 %v901, %v899
  %v1264 = vpack.c.b16 %v904, %v902
  %v1265 = vpack.c.b16 %v905, %v903
  %v1266 = vpack.c.b16 %v908, %v906
  %v1267 = vpack.c.b16 %v909, %v907
  %v1268 = vpack.c.b16 %v912, %v910
  %v1269 = vpack.c.b16 %v913, %v911
  %v1270 = vpack.c.b16 %v916, %v914
  %v1271 = vpack.c.b16 %v917, %v915
  %v1272 = vpack.c.b16 %v920, %v918
  %v1273 = vpack.c.b16 %v921, %v919
  %v1274 = vpack.c.b16 %v924, %v922
  %v1275 = vpack.c.b16 %v925, %v923
  %v1276 = vpack.c.b16 %v928, %v926
  %v1277 = vpack.c.b16 %v929, %v927
  %v1278 = vpack.c.b16 %v932, %v930
  %v1279 = vpack.c.b16 %v933, %v931
  %v1280 = vpack.c.b16 %v936, %v934
  %v1281 = vpack.c.b16 %v937, %v935
  %v1282 = vpack.c.b16 %v940, %v938
  %v1283 = vpack.c.b16 %v941, %v939
  %v1284 = vpack.c.b16 %v944, %v942
  %v1285 = vpack.c.b16 %v945, %v943
  %v1286 = vpack.c.b16 %v948, %v946
  %v1287 = vpack.c.b16 %v949, %v947
  %v1288 = vpack.c.b16 %v952, %v950
  %v1289 = vpack.c.b16 %v953, %v951
  %v1290 = vpack.c.b16 %v956, %v954
  %v1291 = vpack.c.b16 %v957, %v955
  %v1292 = vpack.c.b16 %v960, %v958
  %v1293 = vpack.c.b16 %v961, %v959
  %v1294 = vpack.c.b16 %v964, %v962
  %v1295 = vpack.c.b16 %v965, %v963
  %v1296 = vpack.c.b16 %v968, %v966
  %v1297 = vpack.c.b16 %v969, %v967
  %v1298 = vpack.c.b16 %v972, %v970
  %v1299 = vpack.c.b16 %v973, %v971
  %v1300 = vpack.c.b16 %v976, %v974
  %v1301 = vpack.c.b16 %v977, %v975
  %v1302 = vpack.c.b16 %v980, %v978
  %v1303 = vpack.c.b16 %v981, %v979
  %v1304 = vpack.c.b16 %v984, %v982
  %v1305 = vpack.c.b16 %v985, %v983
  %v1306 = vpack.c.b16 %v988, %v986
  %v1307 = vpack.c.b16 %v989, %v987
  %v1308 = vpack.c.b16 %v992, %v990
  %v1309 = vpack.c.b16 %v993, %v991
  %v1310 = vpack.c.b16 %v996, %v994
  %v1311 = vpack.c.b16 %v997, %v995
  %v1312 = vpack.c.b16 %v1000, %v998
  %v1313 = vpack.c.b16 %v1001, %v999
  %v1314 = vpack.c.b16 %v1004, %v1002
  %v1315 = vpack.c.b16 %v1005, %v1003
  %v1316 = vpack.c.b16 %v1008, %v1006
  %v1317 = vpack.c.b16 %v1009, %v1007
  %v1318 = vpack.c.b16 %v1012, %v1010
  %v1319 = vpack.c.b16 %v1013, %v1011
  %v1320 = vpack.c.b16 %v1016, %v1014
  %v1321 = vpack.c.b16 %v1017, %v1015
  %v1322 = vpack.c.b16 %v1020, %v1018
  %v1323 = vpack.c.b16 %v1021, %v1019
  %v1324 = vpack.c.b16 %v1024, %v1022
  %v1325 = vpack.c.b16 %v1025, %v1023
  %v1326 = vpack.c.b16 %v1028, %v1026
  %v1327 = vpack.c.b16 %v1029, %v1027
  %v1328 = vpack.c.b16 %v1032, %v1030
  %v1329 = vpack.c.b16 %v1033, %v1031
  %v1330 = vpack.c.b16 %v1036, %v1034
  %v1331 = vpack.c.b16 %v1037, %v1035
  %v1332 = vpack.c.b16 %v1040, %v1038
  %v1333 = vpack.c.b16 %v1041, %v1039
  %v1334 = vpack.c.b16 %v1044, %v1042
  %v1335 = vpack.c.b16 %v1045, %v1043
  %v1336 = vpack.c.b16 %v1048, %v1046
  %v1337 = vpack.c.b16 %v1049, %v1047
  %v1338 = vpack.c.b16 %v1052, %v1050
  %v1339 = vpack.c.b16 %v1053, %v1051
  %v1340 = vpack.c.b16 %v1056, %v1054
  %v1341 = vpack.c.b16 %v1057, %v1055
  %v1342 = vpack.c.b16 %v1060, %v1058
  %v1343 = vpack.c.b16 %v1061, %v1059
  %v1344 = vpack.c.b16 %v1064, %v1062
  %v1345 = vpack.c.b16 %v1065, %v1063
  %v1346 = vpack.c.b16 %v1068, %v1066
  %v1347 = vpack.c.b16 %v1069, %v1067
  %v1348 = vpack.c.b16 %v1072, %v1070
  %v1349 = vpack.c.b16 %v1073, %v1071
  %v1350 = vpack.c.b16 %v1076, %v1074
  %v1351 = vpack.c.b16 %v1077, %v1075
  %v1352 = vpack.c.b16 %v1080, %v1078
  %v1353 = vpack.c.b16 %v1081, %v1079
  %v1354 = vpack.c.b16 %v1084, %v1082
  %v1355 = vpack.c.b16 %v1085, %v1083
  %v1356 = vpack.c.b16 %v1088, %v1086
  %v1357 = vpack.c.b16 %v1089, %v1087
  %v1358 = vpack.c.b16 %v1092, %v1090
  %v1359 = vpack.c.b16 %v1093, %v1091
  %v1360 = vpack.c.b16 %v1096, %v1094
  %v1361 = vpack.c.b16 %v1097, %v1095
  %v1362 = vpack.c.b16 %v1100, %v1098
  %v1363 = vpack.c.b16 %v1101, %v1099
  %v1364 = vpack.c.b16 %v1104, %v1102
  %v1365 = vpack.c.b16 %v1105, %v1103
  %v1366 = vpack.c.b16 %v1108, %v1106
  %v1367 = vpack.c.b16 %v1109, %v1107
  %v1368 = vpack.c.b16 %v1112, %v1110
  %v1369 = vpack.c.b16 %v1113, %v1111
  %1626 = vmatpush.bf16.msra.mxu0 %v1128
  %1627 = vmatpush.bf16.msra.mxu0 %v1126
  %1628 = vmatpush.bf16.msra.mxu0 %v1124
  %1629 = vmatpush.bf16.msra.mxu0 %v1122
  %1630 = vmatpush.bf16.msra.mxu0 %v1120
  %1631 = vmatpush.bf16.msra.mxu0 %v1118
  %1632 = vmatpush.bf16.msra.mxu0 %v1116
  %1633 = vmatpush.bf16.msra.mxu0 %v1114
  %1634 = vmatmul.bf16.gmra.mxu0 %v314
  %v1635 = vpop.f32.mrf.mxu0
  %v1636 = vadd.f32 %v286, %v1635
  %v1637 = vpop.f32.mrf.mxu0
  %1638 = vdwg.mxu0
  %1639 = vmatpush.bf16.msra.mxu0 %v1144
  %1640 = vmatpush.bf16.msra.mxu0 %v1142
  %1641 = vmatpush.bf16.msra.mxu0 %v1140
  %1642 = vmatpush.bf16.msra.mxu0 %v1138
  %1643 = vmatpush.bf16.msra.mxu0 %v1136
  %1644 = vmatpush.bf16.msra.mxu0 %v1134
  %1645 = vmatpush.bf16.msra.mxu0 %v1132
  %1646 = vmatpush.bf16.msra.mxu0 %v1130
  %1647 = vmatmul.bf16.gmra.mxu0 %v315
  %v1648 = vpop.f32.mrf.mxu0
  %v1649 = vadd.f32 %v1636, %v1648
  %v1650 = vpop.f32.mrf.mxu0
  %1651 = vdwg.mxu0
  %1652 = vmatpush.bf16.msra.mxu0 %v1160
  %1653 = vmatpush.bf16.msra.mxu0 %v1158
  %1654 = vmatpush.bf16.msra.mxu0 %v1156
  %1655 = vmatpush.bf16.msra.mxu0 %v1154
  %1656 = vmatpush.bf16.msra.mxu0 %v1152
  %1657 = vmatpush.bf16.msra.mxu0 %v1150
  %1658 = vmatpush.bf16.msra.mxu0 %v1148
  %1659 = vmatpush.bf16.msra.mxu0 %v1146
  %1660 = vmatmul.bf16.gmra.mxu0 %v316
  %v1661 = vpop.f32.mrf.mxu0
  %v1662 = vadd.f32 %v1649, %v1661
  %v1663 = vpop.f32.mrf.mxu0
  %1664 = vdwg.mxu0
  %1665 = vmatpush.bf16.msra.mxu0 %v1176
  %1666 = vmatpush.bf16.msra.mxu0 %v1174
  %1667 = vmatpush.bf16.msra.mxu0 %v1172
  %1668 = vmatpush.bf16.msra.mxu0 %v1170
  %1669 = vmatpush.bf16.msra.mxu0 %v1168
  %1670 = vmatpush.bf16.msra.mxu0 %v1166
  %1671 = vmatpush.bf16.msra.mxu0 %v1164
  %1672 = vmatpush.bf16.msra.mxu0 %v1162
  %1673 = vmatmul.bf16.gmra.mxu0 %v317
  %v1674 = vpop.f32.mrf.mxu0
  %v1675 = vadd.f32 %v1662, %v1674
  %v1676 = vpop.f32.mrf.mxu0
  %1677 = vdwg.mxu0
  %1678 = vmatpush.bf16.msra.mxu0 %v1192
  %1679 = vmatpush.bf16.msra.mxu0 %v1190
  %1680 = vmatpush.bf16.msra.mxu0 %v1188
  %1681 = vmatpush.bf16.msra.mxu0 %v1186
  %1682 = vmatpush.bf16.msra.mxu0 %v1184
  %1683 = vmatpush.bf16.msra.mxu0 %v1182
  %1684 = vmatpush.bf16.msra.mxu0 %v1180
  %1685 = vmatpush.bf16.msra.mxu0 %v1178
  %1686 = vmatmul.bf16.gmra.mxu0 %v318
  %v1687 = vpop.f32.mrf.mxu0
  %v1688 = vadd.f32 %v1675, %v1687
  %v1689 = vpop.f32.mrf.mxu0
  %1690 = vdwg.mxu0
  %1691 = vmatpush.bf16.msra.mxu0 %v1208
  %1692 = vmatpush.bf16.msra.mxu0 %v1206
  %1693 = vmatpush.bf16.msra.mxu0 %v1204
  %1694 = vmatpush.bf16.msra.mxu0 %v1202
  %1695 = vmatpush.bf16.msra.mxu0 %v1200
  %1696 = vmatpush.bf16.msra.mxu0 %v1198
  %1697 = vmatpush.bf16.msra.mxu0 %v1196
  %1698 = vmatpush.bf16.msra.mxu0 %v1194
  %1699 = vmatmul.bf16.gmra.mxu0 %v319
  %v1700 = vpop.f32.mrf.mxu0
  %v1701 = vadd.f32 %v1688, %v1700
  %v1702 = vpop.f32.mrf.mxu0
  %1703 = vdwg.mxu0
  %1704 = vmatpush.bf16.msra.mxu0 %v1224
  %1705 = vmatpush.bf16.msra.mxu0 %v1222
  %1706 = vmatpush.bf16.msra.mxu0 %v1220
  %1707 = vmatpush.bf16.msra.mxu0 %v1218
  %1708 = vmatpush.bf16.msra.mxu0 %v1216
  %1709 = vmatpush.bf16.msra.mxu0 %v1214
  %1710 = vmatpush.bf16.msra.mxu0 %v1212
  %1711 = vmatpush.bf16.msra.mxu0 %v1210
  %1712 = vmatmul.bf16.gmra.mxu0 %v320
  %v1713 = vpop.f32.mrf.mxu0
  %v1714 = vadd.f32 %v1701, %v1713
  %v1715 = vpop.f32.mrf.mxu0
  %1716 = vdwg.mxu0
  %1717 = vmatpush.bf16.msra.mxu0 %v1240
  %1718 = vmatpush.bf16.msra.mxu0 %v1238
  %1719 = vmatpush.bf16.msra.mxu0 %v1236
  %1720 = vmatpush.bf16.msra.mxu0 %v1234
  %1721 = vmatpush.bf16.msra.mxu0 %v1232
  %1722 = vmatpush.bf16.msra.mxu0 %v1230
  %1723 = vmatpush.bf16.msra.mxu0 %v1228
  %1724 = vmatpush.bf16.msra.mxu0 %v1226
  %1725 = vmatmul.bf16.gmra.mxu0 %v321
  %v1726 = vpop.f32.mrf.mxu0
  %v1727 = vadd.f32 %v1714, %v1726
  %v1728 = vpop.f32.mrf.mxu0
  %1729 = vdwg.mxu0
  %1730 = vmatpush.bf16.msra.mxu0 %v1256
  %1731 = vmatpush.bf16.msra.mxu0 %v1254
  %1732 = vmatpush.bf16.msra.mxu0 %v1252
  %1733 = vmatpush.bf16.msra.mxu0 %v1250
  %1734 = vmatpush.bf16.msra.mxu0 %v1248
  %1735 = vmatpush.bf16.msra.mxu0 %v1246
  %1736 = vmatpush.bf16.msra.mxu0 %v1244
  %1737 = vmatpush.bf16.msra.mxu0 %v1242
  %1738 = vmatmul.bf16.gmra.mxu0 %v322
  %v1739 = vpop.f32.mrf.mxu0
  %v1740 = vadd.f32 %v1727, %v1739
  %v1741 = vpop.f32.mrf.mxu0
  %1742 = vdwg.mxu0
  %1743 = vmatpush.bf16.msra.mxu0 %v1272
  %1744 = vmatpush.bf16.msra.mxu0 %v1270
  %1745 = vmatpush.bf16.msra.mxu0 %v1268
  %1746 = vmatpush.bf16.msra.mxu0 %v1266
  %1747 = vmatpush.bf16.msra.mxu0 %v1264
  %1748 = vmatpush.bf16.msra.mxu0 %v1262
  %1749 = vmatpush.bf16.msra.mxu0 %v1260
  %1750 = vmatpush.bf16.msra.mxu0 %v1258
  %1751 = vmatmul.bf16.gmra.mxu0 %v323
  %v1752 = vpop.f32.mrf.mxu0
  %v1753 = vadd.f32 %v1740, %v1752
  %v1754 = vpop.f32.mrf.mxu0
  %1755 = vdwg.mxu0
  %1756 = vmatpush.bf16.msra.mxu0 %v1288
  %1757 = vmatpush.bf16.msra.mxu0 %v1286
  %1758 = vmatpush.bf16.msra.mxu0 %v1284
  %1759 = vmatpush.bf16.msra.mxu0 %v1282
  %1760 = vmatpush.bf16.msra.mxu0 %v1280
  %1761 = vmatpush.bf16.msra.mxu0 %v1278
  %1762 = vmatpush.bf16.msra.mxu0 %v1276
  %1763 = vmatpush.bf16.msra.mxu0 %v1274
  %1764 = vmatmul.bf16.gmra.mxu0 %v324
  %v1765 = vpop.f32.mrf.mxu0
  %v1766 = vadd.f32 %v1753, %v1765
  %v1767 = vpop.f32.mrf.mxu0
  %1768 = vdwg.mxu0
  %1769 = vmatpush.bf16.msra.mxu0 %v1304
  %1770 = vmatpush.bf16.msra.mxu0 %v1302
  %1771 = vmatpush.bf16.msra.mxu0 %v1300
  %1772 = vmatpush.bf16.msra.mxu0 %v1298
  %1773 = vmatpush.bf16.msra.mxu0 %v1296
  %1774 = vmatpush.bf16.msra.mxu0 %v1294
  %1775 = vmatpush.bf16.msra.mxu0 %v1292
  %1776 = vmatpush.bf16.msra.mxu0 %v1290
  %1777 = vmatmul.bf16.gmra.mxu0 %v325
  %v1778 = vpop.f32.mrf.mxu0
  %v1779 = vadd.f32 %v1766, %v1778
  %v1780 = vpop.f32.mrf.mxu0
  %1781 = vdwg.mxu0
  %1782 = vmatpush.bf16.msra.mxu0 %v1320
  %1783 = vmatpush.bf16.msra.mxu0 %v1318
  %1784 = vmatpush.bf16.msra.mxu0 %v1316
  %1785 = vmatpush.bf16.msra.mxu0 %v1314
  %1786 = vmatpush.bf16.msra.mxu0 %v1312
  %1787 = vmatpush.bf16.msra.mxu0 %v1310
  %1788 = vmatpush.bf16.msra.mxu0 %v1308
  %1789 = vmatpush.bf16.msra.mxu0 %v1306
  %1790 = vmatmul.bf16.gmra.mxu0 %v326
  %v1791 = vpop.f32.mrf.mxu0
  %v1792 = vadd.f32 %v1779, %v1791
  %v1793 = vpop.f32.mrf.mxu0
  %1794 = vdwg.mxu0
  %1795 = vmatpush.bf16.msra.mxu0 %v1336
  %1796 = vmatpush.bf16.msra.mxu0 %v1334
  %1797 = vmatpush.bf16.msra.mxu0 %v1332
  %1798 = vmatpush.bf16.msra.mxu0 %v1330
  %1799 = vmatpush.bf16.msra.mxu0 %v1328
  %1800 = vmatpush.bf16.msra.mxu0 %v1326
  %1801 = vmatpush.bf16.msra.mxu0 %v1324
  %1802 = vmatpush.bf16.msra.mxu0 %v1322
  %1803 = vmatmul.bf16.gmra.mxu0 %v327
  %v1804 = vpop.f32.mrf.mxu0
  %v1805 = vadd.f32 %v1792, %v1804
  %v1806 = vpop.f32.mrf.mxu0
  %1807 = vdwg.mxu0
  %1808 = vmatpush.bf16.msra.mxu0 %v1352
  %1809 = vmatpush.bf16.msra.mxu0 %v1350
  %1810 = vmatpush.bf16.msra.mxu0 %v1348
  %1811 = vmatpush.bf16.msra.mxu0 %v1346
  %1812 = vmatpush.bf16.msra.mxu0 %v1344
  %1813 = vmatpush.bf16.msra.mxu0 %v1342
  %1814 = vmatpush.bf16.msra.mxu0 %v1340
  %1815 = vmatpush.bf16.msra.mxu0 %v1338
  %1816 = vmatmul.bf16.gmra.mxu0 %v328
  %v1817 = vpop.f32.mrf.mxu0
  %v1818 = vadd.f32 %v1805, %v1817
  %v1819 = vpop.f32.mrf.mxu0
  %1820 = vdwg.mxu0
  %1821 = vmatpush.bf16.msra.mxu0 %v1368
  %1822 = vmatpush.bf16.msra.mxu0 %v1366
  %1823 = vmatpush.bf16.msra.mxu0 %v1364
  %1824 = vmatpush.bf16.msra.mxu0 %v1362
  %1825 = vmatpush.bf16.msra.mxu0 %v1360
  %1826 = vmatpush.bf16.msra.mxu0 %v1358
  %1827 = vmatpush.bf16.msra.mxu0 %v1356
  %1828 = vmatpush.bf16.msra.mxu0 %v1354
  %1829 = vmatmul.bf16.gmra.mxu0 %v329
  %v1830 = vpop.f32.mrf.mxu0
  %v1831 = vadd.f32 %v1818, %v1830
  %v1832 = vpop.f32.mrf.mxu0
  %1833 = vdwg.mxu0
  %1834 = vmatpush.bf16.msra.mxu0 %v1129
  %1835 = vmatpush.bf16.msra.mxu0 %v1127
  %1836 = vmatpush.bf16.msra.mxu0 %v1125
  %1837 = vmatpush.bf16.msra.mxu0 %v1123
  %1838 = vmatpush.bf16.msra.mxu0 %v1121
  %1839 = vmatpush.bf16.msra.mxu0 %v1119
  %1840 = vmatpush.bf16.msra.mxu0 %v1117
  %1841 = vmatpush.bf16.msra.mxu0 %v1115
  %1842 = vmatmul.bf16.gmra.mxu0 %v314
  %v1843 = vpop.f32.mrf.mxu0
  %v1844 = vadd.f32 %v287, %v1843
  %v1845 = vpop.f32.mrf.mxu0
  %1846 = vdwg.mxu0
  %1847 = vmatpush.bf16.msra.mxu0 %v1145
  %1848 = vmatpush.bf16.msra.mxu0 %v1143
  %1849 = vmatpush.bf16.msra.mxu0 %v1141
  %1850 = vmatpush.bf16.msra.mxu0 %v1139
  %1851 = vmatpush.bf16.msra.mxu0 %v1137
  %1852 = vmatpush.bf16.msra.mxu0 %v1135
  %1853 = vmatpush.bf16.msra.mxu0 %v1133
  %1854 = vmatpush.bf16.msra.mxu0 %v1131
  %1855 = vmatmul.bf16.gmra.mxu0 %v315
  %v1856 = vpop.f32.mrf.mxu0
  %v1857 = vadd.f32 %v1844, %v1856
  %v1858 = vpop.f32.mrf.mxu0
  %1859 = vdwg.mxu0
  %1860 = vmatpush.bf16.msra.mxu0 %v1161
  %1861 = vmatpush.bf16.msra.mxu0 %v1159
  %1862 = vmatpush.bf16.msra.mxu0 %v1157
  %1863 = vmatpush.bf16.msra.mxu0 %v1155
  %1864 = vmatpush.bf16.msra.mxu0 %v1153
  %1865 = vmatpush.bf16.msra.mxu0 %v1151
  %1866 = vmatpush.bf16.msra.mxu0 %v1149
  %1867 = vmatpush.bf16.msra.mxu0 %v1147
  %1868 = vmatmul.bf16.gmra.mxu0 %v316
  %v1869 = vpop.f32.mrf.mxu0
  %v1870 = vadd.f32 %v1857, %v1869
  %v1871 = vpop.f32.mrf.mxu0
  %1872 = vdwg.mxu0
  %1873 = vmatpush.bf16.msra.mxu0 %v1177
  %1874 = vmatpush.bf16.msra.mxu0 %v1175
  %1875 = vmatpush.bf16.msra.mxu0 %v1173
  %1876 = vmatpush.bf16.msra.mxu0 %v1171
  %1877 = vmatpush.bf16.msra.mxu0 %v1169
  %1878 = vmatpush.bf16.msra.mxu0 %v1167
  %1879 = vmatpush.bf16.msra.mxu0 %v1165
  %1880 = vmatpush.bf16.msra.mxu0 %v1163
  %1881 = vmatmul.bf16.gmra.mxu0 %v317
  %v1882 = vpop.f32.mrf.mxu0
  %v1883 = vadd.f32 %v1870, %v1882
  %v1884 = vpop.f32.mrf.mxu0
  %1885 = vdwg.mxu0
  %1886 = vmatpush.bf16.msra.mxu0 %v1193
  %1887 = vmatpush.bf16.msra.mxu0 %v1191
  %1888 = vmatpush.bf16.msra.mxu0 %v1189
  %1889 = vmatpush.bf16.msra.mxu0 %v1187
  %1890 = vmatpush.bf16.msra.mxu0 %v1185
  %1891 = vmatpush.bf16.msra.mxu0 %v1183
  %1892 = vmatpush.bf16.msra.mxu0 %v1181
  %1893 = vmatpush.bf16.msra.mxu0 %v1179
  %1894 = vmatmul.bf16.gmra.mxu0 %v318
  %v1895 = vpop.f32.mrf.mxu0
  %v1896 = vadd.f32 %v1883, %v1895
  %v1897 = vpop.f32.mrf.mxu0
  %1898 = vdwg.mxu0
  %1899 = vmatpush.bf16.msra.mxu0 %v1209
  %1900 = vmatpush.bf16.msra.mxu0 %v1207
  %1901 = vmatpush.bf16.msra.mxu0 %v1205
  %1902 = vmatpush.bf16.msra.mxu0 %v1203
  %1903 = vmatpush.bf16.msra.mxu0 %v1201
  %1904 = vmatpush.bf16.msra.mxu0 %v1199
  %1905 = vmatpush.bf16.msra.mxu0 %v1197
  %1906 = vmatpush.bf16.msra.mxu0 %v1195
  %1907 = vmatmul.bf16.gmra.mxu0 %v319
  %v1908 = vpop.f32.mrf.mxu0
  %v1909 = vadd.f32 %v1896, %v1908
  %v1910 = vpop.f32.mrf.mxu0
  %1911 = vdwg.mxu0
  %1912 = vmatpush.bf16.msra.mxu0 %v1225
  %1913 = vmatpush.bf16.msra.mxu0 %v1223
  %1914 = vmatpush.bf16.msra.mxu0 %v1221
  %1915 = vmatpush.bf16.msra.mxu0 %v1219
  %1916 = vmatpush.bf16.msra.mxu0 %v1217
  %1917 = vmatpush.bf16.msra.mxu0 %v1215
  %1918 = vmatpush.bf16.msra.mxu0 %v1213
  %1919 = vmatpush.bf16.msra.mxu0 %v1211
  %1920 = vmatmul.bf16.gmra.mxu0 %v320
  %v1921 = vpop.f32.mrf.mxu0
  %v1922 = vadd.f32 %v1909, %v1921
  %v1923 = vpop.f32.mrf.mxu0
  %1924 = vdwg.mxu0
  %1925 = vmatpush.bf16.msra.mxu0 %v1241
  %1926 = vmatpush.bf16.msra.mxu0 %v1239
  %1927 = vmatpush.bf16.msra.mxu0 %v1237
  %1928 = vmatpush.bf16.msra.mxu0 %v1235
  %1929 = vmatpush.bf16.msra.mxu0 %v1233
  %1930 = vmatpush.bf16.msra.mxu0 %v1231
  %1931 = vmatpush.bf16.msra.mxu0 %v1229
  %1932 = vmatpush.bf16.msra.mxu0 %v1227
  %1933 = vmatmul.bf16.gmra.mxu0 %v321
  %v1934 = vpop.f32.mrf.mxu0
  %v1935 = vadd.f32 %v1922, %v1934
  %v1936 = vpop.f32.mrf.mxu0
  %1937 = vdwg.mxu0
  %1938 = vmatpush.bf16.msra.mxu0 %v1257
  %1939 = vmatpush.bf16.msra.mxu0 %v1255
  %1940 = vmatpush.bf16.msra.mxu0 %v1253
  %1941 = vmatpush.bf16.msra.mxu0 %v1251
  %1942 = vmatpush.bf16.msra.mxu0 %v1249
  %1943 = vmatpush.bf16.msra.mxu0 %v1247
  %1944 = vmatpush.bf16.msra.mxu0 %v1245
  %1945 = vmatpush.bf16.msra.mxu0 %v1243
  %1946 = vmatmul.bf16.gmra.mxu0 %v322
  %v1947 = vpop.f32.mrf.mxu0
  %v1948 = vadd.f32 %v1935, %v1947
  %v1949 = vpop.f32.mrf.mxu0
  %1950 = vdwg.mxu0
  %1951 = vmatpush.bf16.msra.mxu0 %v1273
  %1952 = vmatpush.bf16.msra.mxu0 %v1271
  %1953 = vmatpush.bf16.msra.mxu0 %v1269
  %1954 = vmatpush.bf16.msra.mxu0 %v1267
  %1955 = vmatpush.bf16.msra.mxu0 %v1265
  %1956 = vmatpush.bf16.msra.mxu0 %v1263
  %1957 = vmatpush.bf16.msra.mxu0 %v1261
  %1958 = vmatpush.bf16.msra.mxu0 %v1259
  %1959 = vmatmul.bf16.gmra.mxu0 %v323
  %v1960 = vpop.f32.mrf.mxu0
  %v1961 = vadd.f32 %v1948, %v1960
  %v1962 = vpop.f32.mrf.mxu0
  %1963 = vdwg.mxu0
  %1964 = vmatpush.bf16.msra.mxu0 %v1289
  %1965 = vmatpush.bf16.msra.mxu0 %v1287
  %1966 = vmatpush.bf16.msra.mxu0 %v1285
  %1967 = vmatpush.bf16.msra.mxu0 %v1283
  %1968 = vmatpush.bf16.msra.mxu0 %v1281
  %1969 = vmatpush.bf16.msra.mxu0 %v1279
  %1970 = vmatpush.bf16.msra.mxu0 %v1277
  %1971 = vmatpush.bf16.msra.mxu0 %v1275
  %1972 = vmatmul.bf16.gmra.mxu0 %v324
  %v1973 = vpop.f32.mrf.mxu0
  %v1974 = vadd.f32 %v1961, %v1973
  %v1975 = vpop.f32.mrf.mxu0
  %1976 = vdwg.mxu0
  %1977 = vmatpush.bf16.msra.mxu0 %v1305
  %1978 = vmatpush.bf16.msra.mxu0 %v1303
  %1979 = vmatpush.bf16.msra.mxu0 %v1301
  %1980 = vmatpush.bf16.msra.mxu0 %v1299
  %1981 = vmatpush.bf16.msra.mxu0 %v1297
  %1982 = vmatpush.bf16.msra.mxu0 %v1295
  %1983 = vmatpush.bf16.msra.mxu0 %v1293
  %1984 = vmatpush.bf16.msra.mxu0 %v1291
  %1985 = vmatmul.bf16.gmra.mxu0 %v325
  %v1986 = vpop.f32.mrf.mxu0
  %v1987 = vadd.f32 %v1974, %v1986
  %v1988 = vpop.f32.mrf.mxu0
  %1989 = vdwg.mxu0
  %1990 = vmatpush.bf16.msra.mxu0 %v1321
  %1991 = vmatpush.bf16.msra.mxu0 %v1319
  %1992 = vmatpush.bf16.msra.mxu0 %v1317
  %1993 = vmatpush.bf16.msra.mxu0 %v1315
  %1994 = vmatpush.bf16.msra.mxu0 %v1313
  %1995 = vmatpush.bf16.msra.mxu0 %v1311
  %1996 = vmatpush.bf16.msra.mxu0 %v1309
  %1997 = vmatpush.bf16.msra.mxu0 %v1307
  %1998 = vmatmul.bf16.gmra.mxu0 %v326
  %v1999 = vpop.f32.mrf.mxu0
  %v2000 = vadd.f32 %v1987, %v1999
  %v2001 = vpop.f32.mrf.mxu0
  %2002 = vdwg.mxu0
  %2003 = vmatpush.bf16.msra.mxu0 %v1337
  %2004 = vmatpush.bf16.msra.mxu0 %v1335
  %2005 = vmatpush.bf16.msra.mxu0 %v1333
  %2006 = vmatpush.bf16.msra.mxu0 %v1331
  %2007 = vmatpush.bf16.msra.mxu0 %v1329
  %2008 = vmatpush.bf16.msra.mxu0 %v1327
  %2009 = vmatpush.bf16.msra.mxu0 %v1325
  %2010 = vmatpush.bf16.msra.mxu0 %v1323
  %2011 = vmatmul.bf16.gmra.mxu0 %v327
  %v2012 = vpop.f32.mrf.mxu0
  %v2013 = vadd.f32 %v2000, %v2012
  %v2014 = vpop.f32.mrf.mxu0
  %2015 = vdwg.mxu0
  %2016 = vmatpush.bf16.msra.mxu0 %v1353
  %2017 = vmatpush.bf16.msra.mxu0 %v1351
  %2018 = vmatpush.bf16.msra.mxu0 %v1349
  %2019 = vmatpush.bf16.msra.mxu0 %v1347
  %2020 = vmatpush.bf16.msra.mxu0 %v1345
  %2021 = vmatpush.bf16.msra.mxu0 %v1343
  %2022 = vmatpush.bf16.msra.mxu0 %v1341
  %2023 = vmatpush.bf16.msra.mxu0 %v1339
  %2024 = vmatmul.bf16.gmra.mxu0 %v328
  %v2025 = vpop.f32.mrf.mxu0
  %v2026 = vadd.f32 %v2013, %v2025
  %v2027 = vpop.f32.mrf.mxu0
  %2028 = vdwg.mxu0
  %2029 = vmatpush.bf16.msra.mxu0 %v1369
  %2030 = vmatpush.bf16.msra.mxu0 %v1367
  %2031 = vmatpush.bf16.msra.mxu0 %v1365
  %2032 = vmatpush.bf16.msra.mxu0 %v1363
  %2033 = vmatpush.bf16.msra.mxu0 %v1361
  %2034 = vmatpush.bf16.msra.mxu0 %v1359
  %2035 = vmatpush.bf16.msra.mxu0 %v1357
  %2036 = vmatpush.bf16.msra.mxu0 %v1355
  %2037 = vmatmul.bf16.gmra.mxu0 %v329
  %v2038 = vpop.f32.mrf.mxu0
  %v2039 = vadd.f32 %v2026, %v2038
  %v2040 = vpop.f32.mrf.mxu0
  %2041 = vdwg.mxu0
  %v2042 = vxor.u32 %v2039, 2147483648
  %v2043 = vmul.f32 %v2042, 1.442695
  %v2044 = vpow.pop %v2043
  %v2045 = vadd.f32 %v2044, 1.0
  %v2046 = vrcp.pop %v2045
  %v2047 = vmul.f32 %v2045, %v2046
  %v2048 = vsub.f32 1.0, %v2047
  %v2049 = vmul.f32 %v2046, %v2048
  %v2050 = vadd.f32 %v2046, %v2049
  %vm2051 = vweird.f32 %v2045
  %vm2052 = vweird.f32 %v2046
  %vm2053 = vmor %vm2051, %vm2052
  %v2054 = vsel %vm2053, %v2046, %v2050
  %v2055 = vand.u32 2147483647, %v2045
  %vm2056 = vcmp.eq.f32.partialorder %v2055, 8.507059e+37
  %v2057 = vand.u32 %v2045, 2147483648
  %v2058 = vor.u32 1.1754944e-38, %v2057
  %v2059 = vsel %vm2056, %v2058, %v2054
  %v2060 = vmul.f32 1.0, %v2059
  %v2061 = vmul.f32 %v1831, %v2060
  %v2062 = vld [vmem:[#allocation2] sm:$0x1]
  %v2063 = vrot.slane %v2061, 4
  %v2064 = vmax.f32 %v2061, %v2063
  %v2065 = vrot.slane %v2064, 2
  %v2066 = vmax.f32 %v2064, %v2065
  %v2067 = vrot.slane %v2066, 1
  %v2068 = vmax.f32 %v2066, %v2067
  %v2069 = vmax.f32 %v2062, %v2068
  %2070 = vst [vmem:[#allocation2] sm:$0x1] %v2069
  %s2071 = scalar_lea.vmem %s0, 64
  %v2072 = vld [vmem:[%s2071] sm:$0xff]
  %v2073 = vld [vmem:[%s2071 + $0x8] sm:$0xff]
  %v2074 = vld [vmem:[%s2071 + $0x10] sm:$0xff]
  %v2075 = vld [vmem:[%s2071 + $0x18] sm:$0xff]
  %v2076 = vld [vmem:[%s2071 + $0x20] sm:$0xff]
  %v2077 = vld [vmem:[%s2071 + $0x28] sm:$0xff]
  %v2078 = vld [vmem:[%s2071 + $0x30] sm:$0xff]
  %v2079 = vld [vmem:[%s2071 + $0x38] sm:$0xff]
  %v2088 = vunpack.c.l.b16 %v2072
  %v2089 = vunpack.c.h.b16 %v2072
  %v2090 = vunpack.c.l.b16 %v2073
  %v2091 = vunpack.c.h.b16 %v2073
  %v2092 = vunpack.c.l.b16 %v2074
  %v2093 = vunpack.c.h.b16 %v2074
  %v2094 = vunpack.c.l.b16 %v2075
  %v2095 = vunpack.c.h.b16 %v2075
  %v2096 = vunpack.c.l.b16 %v2076
  %v2097 = vunpack.c.h.b16 %v2076
  %v2098 = vunpack.c.l.b16 %v2077
  %v2099 = vunpack.c.h.b16 %v2077
  %v2100 = vunpack.c.l.b16 %v2078
  %v2101 = vunpack.c.h.b16 %v2078
  %v2102 = vunpack.c.l.b16 %v2079
  %v2103 = vunpack.c.h.b16 %v2079
  %v2104 = vpack.c.b16 %v2088, %v2088
  %v2105 = vpack.c.b16 %v2089, %v2089
  %v2106 = vpack.c.b16 %v2090, %v2090
  %v2107 = vpack.c.b16 %v2091, %v2091
  %v2108 = vpack.c.b16 %v2092, %v2092
  %v2109 = vpack.c.b16 %v2093, %v2093
  %v2110 = vpack.c.b16 %v2094, %v2094
  %v2111 = vpack.c.b16 %v2095, %v2095
  %v2112 = vpack.c.b16 %v2096, %v2096
  %v2113 = vpack.c.b16 %v2097, %v2097
  %v2114 = vpack.c.b16 %v2098, %v2098
  %v2115 = vpack.c.b16 %v2099, %v2099
  %v2116 = vpack.c.b16 %v2100, %v2100
  %v2117 = vpack.c.b16 %v2101, %v2101
  %v2118 = vpack.c.b16 %v2102, %v2102
  %v2119 = vpack.c.b16 %v2103, %v2103
  %2136 = vmatpush.bf16.msra.mxu0 %v1128
  %2137 = vmatpush.bf16.msra.mxu0 %v1126
  %2138 = vmatpush.bf16.msra.mxu0 %v1124
  %2139 = vmatpush.bf16.msra.mxu0 %v1122
  %2140 = vmatpush.bf16.msra.mxu0 %v1120
  %2141 = vmatpush.bf16.msra.mxu0 %v1118
  %2142 = vmatpush.bf16.msra.mxu0 %v1116
  %2143 = vmatpush.bf16.msra.mxu0 %v1114
  %2144 = vmatmul.bf16.gmra.mxu0 %v2104
  %v2145 = vpop.f32.mrf.mxu0
  %v2146 = vadd.f32 %v286, %v2145
  %v2147 = vpop.f32.mrf.mxu0
  %2148 = vdwg.mxu0
  %2149 = vmatpush.bf16.msra.mxu0 %v1144
  %2150 = vmatpush.bf16.msra.mxu0 %v1142
  %2151 = vmatpush.bf16.msra.mxu0 %v1140
  %2152 = vmatpush.bf16.msra.mxu0 %v1138
  %2153 = vmatpush.bf16.msra.mxu0 %v1136
  %2154 = vmatpush.bf16.msra.mxu0 %v1134
  %2155 = vmatpush.bf16.msra.mxu0 %v1132
  %2156 = vmatpush.bf16.msra.mxu0 %v1130
  %2157 = vmatmul.bf16.gmra.mxu0 %v2105
  %v2158 = vpop.f32.mrf.mxu0
  %v2159 = vadd.f32 %v2146, %v2158
  %v2160 = vpop.f32.mrf.mxu0
  %2161 = vdwg.mxu0
  %2162 = vmatpush.bf16.msra.mxu0 %v1160
  %2163 = vmatpush.bf16.msra.mxu0 %v1158
  %2164 = vmatpush.bf16.msra.mxu0 %v1156
  %2165 = vmatpush.bf16.msra.mxu0 %v1154
  %2166 = vmatpush.bf16.msra.mxu0 %v1152
  %2167 = vmatpush.bf16.msra.mxu0 %v1150
  %2168 = vmatpush.bf16.msra.mxu0 %v1148
  %2169 = vmatpush.bf16.msra.mxu0 %v1146
  %2170 = vmatmul.bf16.gmra.mxu0 %v2106
  %v2171 = vpop.f32.mrf.mxu0
  %v2172 = vadd.f32 %v2159, %v2171
  %v2173 = vpop.f32.mrf.mxu0
  %2174 = vdwg.mxu0
  %2175 = vmatpush.bf16.msra.mxu0 %v1176
  %2176 = vmatpush.bf16.msra.mxu0 %v1174
  %2177 = vmatpush.bf16.msra.mxu0 %v1172
  %2178 = vmatpush.bf16.msra.mxu0 %v1170
  %2179 = vmatpush.bf16.msra.mxu0 %v1168
  %2180 = vmatpush.bf16.msra.mxu0 %v1166
  %2181 = vmatpush.bf16.msra.mxu0 %v1164
  %2182 = vmatpush.bf16.msra.mxu0 %v1162
  %2183 = vmatmul.bf16.gmra.mxu0 %v2107
  %v2184 = vpop.f32.mrf.mxu0
  %v2185 = vadd.f32 %v2172, %v2184
  %v2186 = vpop.f32.mrf.mxu0
  %2187 = vdwg.mxu0
  %2188 = vmatpush.bf16.msra.mxu0 %v1192
  %2189 = vmatpush.bf16.msra.mxu0 %v1190
  %2190 = vmatpush.bf16.msra.mxu0 %v1188
  %2191 = vmatpush.bf16.msra.mxu0 %v1186
  %2192 = vmatpush.bf16.msra.mxu0 %v1184
  %2193 = vmatpush.bf16.msra.mxu0 %v1182
  %2194 = vmatpush.bf16.msra.mxu0 %v1180
  %2195 = vmatpush.bf16.msra.mxu0 %v1178
  %2196 = vmatmul.bf16.gmra.mxu0 %v2108
  %v2197 = vpop.f32.mrf.mxu0
  %v2198 = vadd.f32 %v2185, %v2197
  %v2199 = vpop.f32.mrf.mxu0
  %2200 = vdwg.mxu0
  %2201 = vmatpush.bf16.msra.mxu0 %v1208
  %2202 = vmatpush.bf16.msra.mxu0 %v1206
  %2203 = vmatpush.bf16.msra.mxu0 %v1204
  %2204 = vmatpush.bf16.msra.mxu0 %v1202
  %2205 = vmatpush.bf16.msra.mxu0 %v1200
  %2206 = vmatpush.bf16.msra.mxu0 %v1198
  %2207 = vmatpush.bf16.msra.mxu0 %v1196
  %2208 = vmatpush.bf16.msra.mxu0 %v1194
  %2209 = vmatmul.bf16.gmra.mxu0 %v2109
  %v2210 = vpop.f32.mrf.mxu0
  %v2211 = vadd.f32 %v2198, %v2210
  %v2212 = vpop.f32.mrf.mxu0
  %2213 = vdwg.mxu0
  %2214 = vmatpush.bf16.msra.mxu0 %v1224
  %2215 = vmatpush.bf16.msra.mxu0 %v1222
  %2216 = vmatpush.bf16.msra.mxu0 %v1220
  %2217 = vmatpush.bf16.msra.mxu0 %v1218
  %2218 = vmatpush.bf16.msra.mxu0 %v1216
  %2219 = vmatpush.bf16.msra.mxu0 %v1214
  %2220 = vmatpush.bf16.msra.mxu0 %v1212
  %2221 = vmatpush.bf16.msra.mxu0 %v1210
  %2222 = vmatmul.bf16.gmra.mxu0 %v2110
  %v2223 = vpop.f32.mrf.mxu0
  %v2224 = vadd.f32 %v2211, %v2223
  %v2225 = vpop.f32.mrf.mxu0
  %2226 = vdwg.mxu0
  %2227 = vmatpush.bf16.msra.mxu0 %v1240
  %2228 = vmatpush.bf16.msra.mxu0 %v1238
  %2229 = vmatpush.bf16.msra.mxu0 %v1236
  %2230 = vmatpush.bf16.msra.mxu0 %v1234
  %2231 = vmatpush.bf16.msra.mxu0 %v1232
  %2232 = vmatpush.bf16.msra.mxu0 %v1230
  %2233 = vmatpush.bf16.msra.mxu0 %v1228
  %2234 = vmatpush.bf16.msra.mxu0 %v1226
  %2235 = vmatmul.bf16.gmra.mxu0 %v2111
  %v2236 = vpop.f32.mrf.mxu0
  %v2237 = vadd.f32 %v2224, %v2236
  %v2238 = vpop.f32.mrf.mxu0
  %2239 = vdwg.mxu0
  %2240 = vmatpush.bf16.msra.mxu0 %v1256
  %2241 = vmatpush.bf16.msra.mxu0 %v1254
  %2242 = vmatpush.bf16.msra.mxu0 %v1252
  %2243 = vmatpush.bf16.msra.mxu0 %v1250
  %2244 = vmatpush.bf16.msra.mxu0 %v1248
  %2245 = vmatpush.bf16.msra.mxu0 %v1246
  %2246 = vmatpush.bf16.msra.mxu0 %v1244
  %2247 = vmatpush.bf16.msra.mxu0 %v1242
  %2248 = vmatmul.bf16.gmra.mxu0 %v2112
  %v2249 = vpop.f32.mrf.mxu0
  %v2250 = vadd.f32 %v2237, %v2249
  %v2251 = vpop.f32.mrf.mxu0
  %2252 = vdwg.mxu0
  %2253 = vmatpush.bf16.msra.mxu0 %v1272
  %2254 = vmatpush.bf16.msra.mxu0 %v1270
  %2255 = vmatpush.bf16.msra.mxu0 %v1268
  %2256 = vmatpush.bf16.msra.mxu0 %v1266
  %2257 = vmatpush.bf16.msra.mxu0 %v1264
  %2258 = vmatpush.bf16.msra.mxu0 %v1262
  %2259 = vmatpush.bf16.msra.mxu0 %v1260
  %2260 = vmatpush.bf16.msra.mxu0 %v1258
  %2261 = vmatmul.bf16.gmra.mxu0 %v2113
  %v2262 = vpop.f32.mrf.mxu0
  %v2263 = vadd.f32 %v2250, %v2262
  %v2264 = vpop.f32.mrf.mxu0
  %2265 = vdwg.mxu0
  %2266 = vmatpush.bf16.msra.mxu0 %v1288
  %2267 = vmatpush.bf16.msra.mxu0 %v1286
  %2268 = vmatpush.bf16.msra.mxu0 %v1284
  %2269 = vmatpush.bf16.msra.mxu0 %v1282
  %2270 = vmatpush.bf16.msra.mxu0 %v1280
  %2271 = vmatpush.bf16.msra.mxu0 %v1278
  %2272 = vmatpush.bf16.msra.mxu0 %v1276
  %2273 = vmatpush.bf16.msra.mxu0 %v1274
  %2274 = vmatmul.bf16.gmra.mxu0 %v2114
  %v2275 = vpop.f32.mrf.mxu0
  %v2276 = vadd.f32 %v2263, %v2275
  %v2277 = vpop.f32.mrf.mxu0
  %2278 = vdwg.mxu0
  %2279 = vmatpush.bf16.msra.mxu0 %v1304
  %2280 = vmatpush.bf16.msra.mxu0 %v1302
  %2281 = vmatpush.bf16.msra.mxu0 %v1300
  %2282 = vmatpush.bf16.msra.mxu0 %v1298
  %2283 = vmatpush.bf16.msra.mxu0 %v1296
  %2284 = vmatpush.bf16.msra.mxu0 %v1294
  %2285 = vmatpush.bf16.msra.mxu0 %v1292
  %2286 = vmatpush.bf16.msra.mxu0 %v1290
  %2287 = vmatmul.bf16.gmra.mxu0 %v2115
  %v2288 = vpop.f32.mrf.mxu0
  %v2289 = vadd.f32 %v2276, %v2288
  %v2290 = vpop.f32.mrf.mxu0
  %2291 = vdwg.mxu0
  %2292 = vmatpush.bf16.msra.mxu0 %v1320
  %2293 = vmatpush.bf16.msra.mxu0 %v1318
  %2294 = vmatpush.bf16.msra.mxu0 %v1316
  %2295 = vmatpush.bf16.msra.mxu0 %v1314
  %2296 = vmatpush.bf16.msra.mxu0 %v1312
  %2297 = vmatpush.bf16.msra.mxu0 %v1310
  %2298 = vmatpush.bf16.msra.mxu0 %v1308
  %2299 = vmatpush.bf16.msra.mxu0 %v1306
  %2300 = vmatmul.bf16.gmra.mxu0 %v2116
  %v2301 = vpop.f32.mrf.mxu0
  %v2302 = vadd.f32 %v2289, %v2301
  %v2303 = vpop.f32.mrf.mxu0
  %2304 = vdwg.mxu0
  %2305 = vmatpush.bf16.msra.mxu0 %v1336
  %2306 = vmatpush.bf16.msra.mxu0 %v1334
  %2307 = vmatpush.bf16.msra.mxu0 %v1332
  %2308 = vmatpush.bf16.msra.mxu0 %v1330
  %2309 = vmatpush.bf16.msra.mxu0 %v1328
  %2310 = vmatpush.bf16.msra.mxu0 %v1326
  %2311 = vmatpush.bf16.msra.mxu0 %v1324
  %2312 = vmatpush.bf16.msra.mxu0 %v1322
  %2313 = vmatmul.bf16.gmra.mxu0 %v2117
  %v2314 = vpop.f32.mrf.mxu0
  %v2315 = vadd.f32 %v2302, %v2314
  %v2316 = vpop.f32.mrf.mxu0
  %2317 = vdwg.mxu0
  %2318 = vmatpush.bf16.msra.mxu0 %v1352
  %2319 = vmatpush.bf16.msra.mxu0 %v1350
  %2320 = vmatpush.bf16.msra.mxu0 %v1348
  %2321 = vmatpush.bf16.msra.mxu0 %v1346
  %2322 = vmatpush.bf16.msra.mxu0 %v1344
  %2323 = vmatpush.bf16.msra.mxu0 %v1342
  %2324 = vmatpush.bf16.msra.mxu0 %v1340
  %2325 = vmatpush.bf16.msra.mxu0 %v1338
  %2326 = vmatmul.bf16.gmra.mxu0 %v2118
  %v2327 = vpop.f32.mrf.mxu0
  %v2328 = vadd.f32 %v2315, %v2327
  %v2329 = vpop.f32.mrf.mxu0
  %2330 = vdwg.mxu0
  %2331 = vmatpush.bf16.msra.mxu0 %v1368
  %2332 = vmatpush.bf16.msra.mxu0 %v1366
  %2333 = vmatpush.bf16.msra.mxu0 %v1364
  %2334 = vmatpush.bf16.msra.mxu0 %v1362
  %2335 = vmatpush.bf16.msra.mxu0 %v1360
  %2336 = vmatpush.bf16.msra.mxu0 %v1358
  %2337 = vmatpush.bf16.msra.mxu0 %v1356
  %2338 = vmatpush.bf16.msra.mxu0 %v1354
  %2339 = vmatmul.bf16.gmra.mxu0 %v2119
  %v2340 = vpop.f32.mrf.mxu0
  %v2341 = vadd.f32 %v2328, %v2340
  %v2342 = vpop.f32.mrf.mxu0
  %2343 = vdwg.mxu0
  %2344 = vmatpush.bf16.msra.mxu0 %v1129
  %2345 = vmatpush.bf16.msra.mxu0 %v1127
  %2346 = vmatpush.bf16.msra.mxu0 %v1125
  %2347 = vmatpush.bf16.msra.mxu0 %v1123
  %2348 = vmatpush.bf16.msra.mxu0 %v1121
  %2349 = vmatpush.bf16.msra.mxu0 %v1119
  %2350 = vmatpush.bf16.msra.mxu0 %v1117
  %2351 = vmatpush.bf16.msra.mxu0 %v1115
  %2352 = vmatmul.bf16.gmra.mxu0 %v2104
  %v2353 = vpop.f32.mrf.mxu0
  %v2354 = vadd.f32 %v287, %v2353
  %v2355 = vpop.f32.mrf.mxu0
  %2356 = vdwg.mxu0
  %2357 = vmatpush.bf16.msra.mxu0 %v1145
  %2358 = vmatpush.bf16.msra.mxu0 %v1143
  %2359 = vmatpush.bf16.msra.mxu0 %v1141
  %2360 = vmatpush.bf16.msra.mxu0 %v1139
  %2361 = vmatpush.bf16.msra.mxu0 %v1137
  %2362 = vmatpush.bf16.msra.mxu0 %v1135
  %2363 = vmatpush.bf16.msra.mxu0 %v1133
  %2364 = vmatpush.bf16.msra.mxu0 %v1131
  %2365 = vmatmul.bf16.gmra.mxu0 %v2105
  %v2366 = vpop.f32.mrf.mxu0
  %v2367 = vadd.f32 %v2354, %v2366
  %v2368 = vpop.f32.mrf.mxu0
  %2369 = vdwg.mxu0
  %2370 = vmatpush.bf16.msra.mxu0 %v1161
  %2371 = vmatpush.bf16.msra.mxu0 %v1159
  %2372 = vmatpush.bf16.msra.mxu0 %v1157
  %2373 = vmatpush.bf16.msra.mxu0 %v1155
  %2374 = vmatpush.bf16.msra.mxu0 %v1153
  %2375 = vmatpush.bf16.msra.mxu0 %v1151
  %2376 = vmatpush.bf16.msra.mxu0 %v1149
  %2377 = vmatpush.bf16.msra.mxu0 %v1147
  %2378 = vmatmul.bf16.gmra.mxu0 %v2106
  %v2379 = vpop.f32.mrf.mxu0
  %v2380 = vadd.f32 %v2367, %v2379
  %v2381 = vpop.f32.mrf.mxu0
  %2382 = vdwg.mxu0
  %2383 = vmatpush.bf16.msra.mxu0 %v1177
  %2384 = vmatpush.bf16.msra.mxu0 %v1175
  %2385 = vmatpush.bf16.msra.mxu0 %v1173
  %2386 = vmatpush.bf16.msra.mxu0 %v1171
  %2387 = vmatpush.bf16.msra.mxu0 %v1169
  %2388 = vmatpush.bf16.msra.mxu0 %v1167
  %2389 = vmatpush.bf16.msra.mxu0 %v1165
  %2390 = vmatpush.bf16.msra.mxu0 %v1163
  %2391 = vmatmul.bf16.gmra.mxu0 %v2107
  %v2392 = vpop.f32.mrf.mxu0
  %v2393 = vadd.f32 %v2380, %v2392
  %v2394 = vpop.f32.mrf.mxu0
  %2395 = vdwg.mxu0
  %2396 = vmatpush.bf16.msra.mxu0 %v1193
  %2397 = vmatpush.bf16.msra.mxu0 %v1191
  %2398 = vmatpush.bf16.msra.mxu0 %v1189
  %2399 = vmatpush.bf16.msra.mxu0 %v1187
  %2400 = vmatpush.bf16.msra.mxu0 %v1185
  %2401 = vmatpush.bf16.msra.mxu0 %v1183
  %2402 = vmatpush.bf16.msra.mxu0 %v1181
  %2403 = vmatpush.bf16.msra.mxu0 %v1179
  %2404 = vmatmul.bf16.gmra.mxu0 %v2108
  %v2405 = vpop.f32.mrf.mxu0
  %v2406 = vadd.f32 %v2393, %v2405
  %v2407 = vpop.f32.mrf.mxu0
  %2408 = vdwg.mxu0
  %2409 = vmatpush.bf16.msra.mxu0 %v1209
  %2410 = vmatpush.bf16.msra.mxu0 %v1207
  %2411 = vmatpush.bf16.msra.mxu0 %v1205
  %2412 = vmatpush.bf16.msra.mxu0 %v1203
  %2413 = vmatpush.bf16.msra.mxu0 %v1201
  %2414 = vmatpush.bf16.msra.mxu0 %v1199
  %2415 = vmatpush.bf16.msra.mxu0 %v1197
  %2416 = vmatpush.bf16.msra.mxu0 %v1195
  %2417 = vmatmul.bf16.gmra.mxu0 %v2109
  %v2418 = vpop.f32.mrf.mxu0
  %v2419 = vadd.f32 %v2406, %v2418
  %v2420 = vpop.f32.mrf.mxu0
  %2421 = vdwg.mxu0
  %2422 = vmatpush.bf16.msra.mxu0 %v1225
  %2423 = vmatpush.bf16.msra.mxu0 %v1223
  %2424 = vmatpush.bf16.msra.mxu0 %v1221
  %2425 = vmatpush.bf16.msra.mxu0 %v1219
  %2426 = vmatpush.bf16.msra.mxu0 %v1217
  %2427 = vmatpush.bf16.msra.mxu0 %v1215
  %2428 = vmatpush.bf16.msra.mxu0 %v1213
  %2429 = vmatpush.bf16.msra.mxu0 %v1211
  %2430 = vmatmul.bf16.gmra.mxu0 %v2110
  %v2431 = vpop.f32.mrf.mxu0
  %v2432 = vadd.f32 %v2419, %v2431
  %v2433 = vpop.f32.mrf.mxu0
  %2434 = vdwg.mxu0
  %2435 = vmatpush.bf16.msra.mxu0 %v1241
  %2436 = vmatpush.bf16.msra.mxu0 %v1239
  %2437 = vmatpush.bf16.msra.mxu0 %v1237
  %2438 = vmatpush.bf16.msra.mxu0 %v1235
  %2439 = vmatpush.bf16.msra.mxu0 %v1233
  %2440 = vmatpush.bf16.msra.mxu0 %v1231
  %2441 = vmatpush.bf16.msra.mxu0 %v1229
  %2442 = vmatpush.bf16.msra.mxu0 %v1227
  %2443 = vmatmul.bf16.gmra.mxu0 %v2111
  %v2444 = vpop.f32.mrf.mxu0
  %v2445 = vadd.f32 %v2432, %v2444
  %v2446 = vpop.f32.mrf.mxu0
  %2447 = vdwg.mxu0
  %2448 = vmatpush.bf16.msra.mxu0 %v1257
  %2449 = vmatpush.bf16.msra.mxu0 %v1255
  %2450 = vmatpush.bf16.msra.mxu0 %v1253
  %2451 = vmatpush.bf16.msra.mxu0 %v1251
  %2452 = vmatpush.bf16.msra.mxu0 %v1249
  %2453 = vmatpush.bf16.msra.mxu0 %v1247
  %2454 = vmatpush.bf16.msra.mxu0 %v1245
  %2455 = vmatpush.bf16.msra.mxu0 %v1243
  %2456 = vmatmul.bf16.gmra.mxu0 %v2112
  %v2457 = vpop.f32.mrf.mxu0
  %v2458 = vadd.f32 %v2445, %v2457
  %v2459 = vpop.f32.mrf.mxu0
  %2460 = vdwg.mxu0
  %2461 = vmatpush.bf16.msra.mxu0 %v1273
  %2462 = vmatpush.bf16.msra.mxu0 %v1271
  %2463 = vmatpush.bf16.msra.mxu0 %v1269
  %2464 = vmatpush.bf16.msra.mxu0 %v1267
  %2465 = vmatpush.bf16.msra.mxu0 %v1265
  %2466 = vmatpush.bf16.msra.mxu0 %v1263
  %2467 = vmatpush.bf16.msra.mxu0 %v1261
  %2468 = vmatpush.bf16.msra.mxu0 %v1259
  %2469 = vmatmul.bf16.gmra.mxu0 %v2113
  %v2470 = vpop.f32.mrf.mxu0
  %v2471 = vadd.f32 %v2458, %v2470
  %v2472 = vpop.f32.mrf.mxu0
  %2473 = vdwg.mxu0
  %2474 = vmatpush.bf16.msra.mxu0 %v1289
  %2475 = vmatpush.bf16.msra.mxu0 %v1287
  %2476 = vmatpush.bf16.msra.mxu0 %v1285
  %2477 = vmatpush.bf16.msra.mxu0 %v1283
  %2478 = vmatpush.bf16.msra.mxu0 %v1281
  %2479 = vmatpush.bf16.msra.mxu0 %v1279
  %2480 = vmatpush.bf16.msra.mxu0 %v1277
  %2481 = vmatpush.bf16.msra.mxu0 %v1275
  %2482 = vmatmul.bf16.gmra.mxu0 %v2114
  %v2483 = vpop.f32.mrf.mxu0
  %v2484 = vadd.f32 %v2471, %v2483
  %v2485 = vpop.f32.mrf.mxu0
  %2486 = vdwg.mxu0
  %2487 = vmatpush.bf16.msra.mxu0 %v1305
  %2488 = vmatpush.bf16.msra.mxu0 %v1303
  %2489 = vmatpush.bf16.msra.mxu0 %v1301
  %2490 = vmatpush.bf16.msra.mxu0 %v1299
  %2491 = vmatpush.bf16.msra.mxu0 %v1297
  %2492 = vmatpush.bf16.msra.mxu0 %v1295
  %2493 = vmatpush.bf16.msra.mxu0 %v1293
  %2494 = vmatpush.bf16.msra.mxu0 %v1291
  %2495 = vmatmul.bf16.gmra.mxu0 %v2115
  %v2496 = vpop.f32.mrf.mxu0
  %v2497 = vadd.f32 %v2484, %v2496
  %v2498 = vpop.f32.mrf.mxu0
  %2499 = vdwg.mxu0
  %2500 = vmatpush.bf16.msra.mxu0 %v1321
  %2501 = vmatpush.bf16.msra.mxu0 %v1319
  %2502 = vmatpush.bf16.msra.mxu0 %v1317
  %2503 = vmatpush.bf16.msra.mxu0 %v1315
  %2504 = vmatpush.bf16.msra.mxu0 %v1313
  %2505 = vmatpush.bf16.msra.mxu0 %v1311
  %2506 = vmatpush.bf16.msra.mxu0 %v1309
  %2507 = vmatpush.bf16.msra.mxu0 %v1307
  %2508 = vmatmul.bf16.gmra.mxu0 %v2116
  %v2509 = vpop.f32.mrf.mxu0
  %v2510 = vadd.f32 %v2497, %v2509
  %v2511 = vpop.f32.mrf.mxu0
  %2512 = vdwg.mxu0
  %2513 = vmatpush.bf16.msra.mxu0 %v1337
  %2514 = vmatpush.bf16.msra.mxu0 %v1335
  %2515 = vmatpush.bf16.msra.mxu0 %v1333
  %2516 = vmatpush.bf16.msra.mxu0 %v1331
  %2517 = vmatpush.bf16.msra.mxu0 %v1329
  %2518 = vmatpush.bf16.msra.mxu0 %v1327
  %2519 = vmatpush.bf16.msra.mxu0 %v1325
  %2520 = vmatpush.bf16.msra.mxu0 %v1323
  %2521 = vmatmul.bf16.gmra.mxu0 %v2117
  %v2522 = vpop.f32.mrf.mxu0
  %v2523 = vadd.f32 %v2510, %v2522
  %v2524 = vpop.f32.mrf.mxu0
  %2525 = vdwg.mxu0
  %2526 = vmatpush.bf16.msra.mxu0 %v1353
  %2527 = vmatpush.bf16.msra.mxu0 %v1351
  %2528 = vmatpush.bf16.msra.mxu0 %v1349
  %2529 = vmatpush.bf16.msra.mxu0 %v1347
  %2530 = vmatpush.bf16.msra.mxu0 %v1345
  %2531 = vmatpush.bf16.msra.mxu0 %v1343
  %2532 = vmatpush.bf16.msra.mxu0 %v1341
  %2533 = vmatpush.bf16.msra.mxu0 %v1339
  %2534 = vmatmul.bf16.gmra.mxu0 %v2118
  %v2535 = vpop.f32.mrf.mxu0
  %v2536 = vadd.f32 %v2523, %v2535
  %v2537 = vpop.f32.mrf.mxu0
  %2538 = vdwg.mxu0
  %2539 = vmatpush.bf16.msra.mxu0 %v1369
  %2540 = vmatpush.bf16.msra.mxu0 %v1367
  %2541 = vmatpush.bf16.msra.mxu0 %v1365
  %2542 = vmatpush.bf16.msra.mxu0 %v1363
  %2543 = vmatpush.bf16.msra.mxu0 %v1361
  %2544 = vmatpush.bf16.msra.mxu0 %v1359
  %2545 = vmatpush.bf16.msra.mxu0 %v1357
  %2546 = vmatpush.bf16.msra.mxu0 %v1355
  %2547 = vmatmul.bf16.gmra.mxu0 %v2119
  %v2548 = vpop.f32.mrf.mxu0
  %v2549 = vadd.f32 %v2536, %v2548
  %v2550 = vpop.f32.mrf.mxu0
  %2551 = vdwg.mxu0
  %v2552 = vxor.u32 %v2549, 2147483648
  %v2553 = vmul.f32 %v2552, 1.442695
  %v2554 = vpow.pop %v2553
  %v2555 = vadd.f32 %v2554, 1.0
  %v2556 = vrcp.pop %v2555
  %v2557 = vmul.f32 %v2555, %v2556
  %v2558 = vsub.f32 1.0, %v2557
  %v2559 = vmul.f32 %v2556, %v2558
  %v2560 = vadd.f32 %v2556, %v2559
  %vm2561 = vweird.f32 %v2555
  %vm2562 = vweird.f32 %v2556
  %vm2563 = vmor %vm2561, %vm2562
  %v2564 = vsel %vm2563, %v2556, %v2560
  %v2565 = vand.u32 2147483647, %v2555
  %vm2566 = vcmp.eq.f32.partialorder %v2565, 8.507059e+37
  %v2567 = vand.u32 %v2555, 2147483648
  %v2568 = vor.u32 1.1754944e-38, %v2567
  %v2569 = vsel %vm2566, %v2568, %v2564
  %v2570 = vmul.f32 1.0, %v2569
  %v2571 = vmul.f32 %v2341, %v2570
  %s2572 = scalar_lea.vmem [#allocation2], 1
  %v2573 = vld [vmem:[%s2572] sm:$0x1]
  %v2574 = vrot.slane %v2571, 4
  %v2575 = vmax.f32 %v2571, %v2574
  %v2576 = vrot.slane %v2575, 2
  %v2577 = vmax.f32 %v2575, %v2576
  %v2578 = vrot.slane %v2577, 1
  %v2579 = vmax.f32 %v2577, %v2578
  %v2580 = vmax.f32 %v2573, %v2579
  %2581 = vst [vmem:[%s2572] sm:$0x1] %v2580
  // Predicated region
  $region18: #{malconv_forward.1} parent=0 // pred_check
    %p2582 = pneg %p14
  $region19: #{malconv_forward.1} parent=0 // pred_check_branch
    %2584 = sbr.rel (%p2582) target = $region21
  $region20: #{malconv_forward.1} parent=0 // pred_region
    %v2585 = vld [vmem:[#allocation2] sm:$0x1]
    %v2586 = vld [vmem:[#allocation2 + $0x1] sm:$0x1]
    %2587 = vst [vmem:[%s3] sm:$0x1] %v2585
    %2588 = vst [vmem:[%s3 + $0x1] sm:$0x1] %v2586
  $region21: #{malconv_forward.1} parent=0 // pred_fallthru
    _
  // Predicated region
  $region22: #{malconv_forward.1} parent=0 // pred_check
    _
  $region23: #{malconv_forward.1} parent=0 // pred_check_branch
    %2590 = sbr.rel (0) target = $region25
  $region24: #{malconv_forward.1} parent=0 // pred_region
    _
  $region25: #{malconv_forward.1} parent=0 // pred_fallthru
    _
  // Predicated region
  $region26: #{malconv_forward.1} parent=0 // pred_check
    _
  $region27: #{malconv_forward.1} parent=0 // pred_check_branch
    %2592 = sbr.rel (0) target = $region29
  $region28: #{malconv_forward.1} parent=0 // pred_region
    _
  $region29: #{malconv_forward.1} parent=0 // pred_fallthru
    _

</llo_original>
